<compile_context>
chip_gen: v6e
topology: v6e:2x2x1
jax: 0.10.0
libtpu: 0.0.40
codegen_flags: <defaults>
</compile_context>

<pallas_src>
import functools
import math

import jax
import jax.numpy as jnp
from jax.experimental import pallas as pl
from jax.experimental.pallas import tpu as pltpu

LANE = 128        # lane padding granularity for every feature dimension
SUBLANE = 16      # bf16 sublane granularity (min tile (16,128)) for the batch dimension
MAX_BM = 256      # batch tile size cap (per grid step)


def _rup(x, m):
    return ((x + m - 1) // m) * m


def _vmem_limit_bytes():
    """Generation-aware VMEM budget: ~80% of physical (v5e/v6e: 128 MiB, v7x: 64 MiB)."""
    try:
        return int(pltpu.get_tpu_info().vmem_capacity_bytes * 4 // 5)
    except Exception:
        return 48 * 1024 * 1024   # conservative fallback, safe on all generations


# ----------------------- parameter / pattern construction ------------------ #

def make_pattern(deg, d2, pmax, salt):
    """Deterministic unsigned weight-sharing pattern, values in [1, pmax]."""
    r = jnp.arange(deg, dtype=jnp.int32)[:, None]
    c = jnp.arange(d2, dtype=jnp.int32)[None, :]
    return ((r * 3 + c * 2 + salt) % pmax) + 1


def kaiming_uniform(key, shape):
    fan_in = max(shape[1] * shape[2], 1)
    bound = math.sqrt(2.0) * math.sqrt(3.0 / fan_in)
    return jax.random.uniform(key, shape, jnp.float32, -bound, bound)


def build_gdnn_params(key, in_channels, out_channels, irrep_degrees, input_degree):
    """Build dense (W, b) per layer, exactly as EquivariantAll2RepFlattened.weight_matrix()
    / bias_vector() would assemble them from per-irrep shared weights + patterns."""
    L = len(out_channels)
    layers = []
    for l in range(L):
        oc = out_channels[l]
        # skip-connection blocks, most recent first, then the network input
        ic_list = list(reversed(in_channels[: l + 1]))
        deg_list = [sum(irrep_degrees[l - 1 - j]) for j in range(l)] + [input_degree]
        W_rows, b_rows = [], []
        for m, deg in enumerate(irrep_degrees[l]):           # EquivariantAll2IrrepFlattened
            blocks = []
            for j, (ic, d2) in enumerate(zip(ic_list, deg_list)):
                pmax = max(2, min(d2, 5))
                pattern = make_pattern(deg, d2, pmax, salt=l * 13 + m * 7 + j * 3)
                n_shared = int(pattern.max())                # weights sized by pattern.max()
                key, sub = jax.random.split(key)
                w = kaiming_uniform(sub, (oc, ic, n_shared))
                sign = jnp.sign(pattern).astype(jnp.float32)               # all +1 (unsigned)
                gathered = w[:, :, pattern - 1]                            # (oc, ic, deg, d2)
                block = (sign[None, None] * gathered).transpose(2, 0, 3, 1)
                block = block.reshape(oc * deg, d2 * ic)
                blocks.append(block)
            W_irrep = jnp.concatenate(blocks, axis=1)
            # unsigned irrep => biases exist; torch inits them to zero, here small
            # deterministic values to exercise the bias path.
            key, sub = jax.random.split(key)
            biases = 0.05 * jax.random.normal(sub, (oc,), jnp.float32)
            b_irrep = jnp.tile(biases, deg)                  # biases.repeat(degree)
            W_rows.append(W_irrep)
            b_rows.append(b_irrep)
        layers.append((jnp.concatenate(W_rows, axis=0), jnp.concatenate(b_rows, axis=0)))
    return layers


def pack_gdnn_params(layers, k0):
    """Pre-transpose + lane-pad + bf16-cast weights ONCE (outside the hot path).

    Layer l's dense weight (N_l, K_l) has column blocks [N_{l-1}, ..., N_0, K0]
    (most recent activation first, then the network input).  The hidden part and the
    x0 part are split so the kernel can do two dots (hidden window + X tile) and skip
    the x0 staging copy.  Each hidden block goes at the start of a LANE-padded slot so
    it lines up with the padded activation scratch.  Returns:
      wth_list[l-1] : (sum padded hidden widths, Np_l) bf16, for layers l >= 1
      wtx_list[l]   : (K0p, Np_l)                     bf16
      b_list[l]     : (1, Np_l)                       f32
    """
    n_out = [int(W.shape[0]) for W, _ in layers]
    np_out = [_rup(n, LANE) for n in n_out]
    k0p = _rup(k0, LANE)
    wth_list, wtx_list, b_list = [], [], []
    for l, (W, b) in enumerate(layers):
        dense_h = [n_out[j] for j in range(l - 1, -1, -1)]       # most recent first
        pad_h = [np_out[j] for j in range(l - 1, -1, -1)]
        kh_dense = sum(dense_h)
        Wh, Wx = W[:, :kh_dense], W[:, kh_dense:]
        if l > 0:
            Whp = jnp.zeros((np_out[l], sum(pad_h)), jnp.float32)
            do, po = 0, 0
            for dw, pw in zip(dense_h, pad_h):
                Whp = Whp.at[: n_out[l], po: po + dw].set(Wh[:, do: do + dw])
                do += dw
                po += pw
            wth_list.append(jnp.asarray(Whp.T, jnp.bfloat16))
        Wxp = jnp.zeros((np_out[l], k0p), jnp.float32).at[: n_out[l], :k0].set(Wx)
        wtx_list.append(jnp.asarray(Wxp.T, jnp.bfloat16))
        b_list.append(jnp.zeros((1, np_out[l]), jnp.float32).at[0, : n_out[l]].set(b))
    return wth_list, wtx_list, b_list


# ------------------------------ fused kernel -------------------------------- #

def _make_fused_kernel(L, np_out, h_off, ktot_h):
    def kernel(*refs):
        x_ref = refs[0]
        wth_refs = refs[1: L]                     # L-1 hidden-window weights
        wtx_refs = refs[L: 2 * L]                 # L x0 weights
        b_refs = refs[2 * L: 3 * L]               # L biases (f32)
        o_ref = refs[3 * L]
        act_ref = refs[3 * L + 1]                 # bf16 scratch: [ h_{L-2} | ... | h_0 ]

        x = x_ref[...]                            # (bm, k0p) bf16, loaded once
        for l in range(L):                        # static unroll over layers
            z = jnp.dot(x, wtx_refs[l][...], preferred_element_type=jnp.float32)
            if l > 0:                             # skip-concat window (contiguous slice)
                win = act_ref[:, h_off[l - 1]: ktot_h]
                z = z + jnp.dot(win, wth_refs[l - 1][...],
                                preferred_element_type=jnp.float32)
            b = b_refs[l][...]
            if l < L - 1:
                # fused GDNN nonlinearity: relu(y) - (y - bias)/2 == relu(z + b) - z/2
                # (zero-padded lanes stay exactly zero: z = 0, b = 0 there)
                h = jnp.maximum(z + b, 0.0) - 0.5 * z
                act_ref[:, h_off[l]: h_off[l] + np_out[l]] = h.astype(jnp.bfloat16)
            else:
                o_ref[...] = z + b

    return kernel


@functools.partial(jax.jit, static_argnames=("n_out_last", "single_buffer"))
def gdnn_forward_pallas(X, wth_list, wtx_list, b_list, *, n_out_last, single_buffer=True):
    B, C, F = X.shape
    k0 = C * F
    L = len(wtx_list)
    np_out = [int(w.shape[1]) for w in wtx_list]
    k0p = int(wtx_list[0].shape[0])

    # hidden-activation buffer layout (prepend == torch.cat([h, out1], 1)):
    #   [ h_{L-2} | ... | h_0 ]   (lane-padded blocks; x0 read directly from the X tile)
    ktot_h = sum(np_out[: L - 1])
    h_off, acc = [], ktot_h
    for l in range(L - 1):
        acc -= np_out[l]
        h_off.append(acc)
    scratch_cols = max(ktot_h, LANE)

    # batch tiling: sublane(16)-aligned, large tiles; >=2 grid steps when possible so both
    # TensorCores get work on v7x (megacore, "parallel" axis).
    bm = min(_rup(B, SUBLANE), MAX_BM)
    if B <= bm and B > SUBLANE:
        bm = _rup((B + 1) // 2, SUBLANE)
    bpad = _rup(B, bm)

    # flatten + pad input: (B, C, F) -> (B, F*C) -> (Bp, K0p) bf16
    out1 = jnp.transpose(X, (0, 2, 1)).reshape(B, k0)
    xp = jnp.zeros((bpad, k0p), jnp.bfloat16).at[:B, :k0].set(out1.astype(jnp.bfloat16))

    def const_spec(shape):
        idx_map = lambda i: (0,) * len(shape)
        if single_buffer:
            # grid-invariant operand -> no double buffering (halves weight VMEM)
            return pl.BlockSpec(shape, idx_map, pipeline_mode=pl.Buffered(buffer_count=1))
        return pl.BlockSpec(shape, idx_map)

    in_specs = ([pl.BlockSpec((bm, k0p), lambda i: (i, 0))]
                + [const_spec(tuple(w.shape)) for w in wth_list]
                + [const_spec(tuple(w.shape)) for w in wtx_list]
                + [const_spec(tuple(b.shape)) for b in b_list])

    kernel = _make_fused_kernel(L, np_out, h_off, ktot_h)

    out = pl.pallas_call(
        kernel,
        out_shape=jax.ShapeDtypeStruct((bpad, np_out[-1]), jnp.float32),
        grid=(bpad // bm,),                                      # batch-parallel grid axis
        in_specs=in_specs,
        out_specs=pl.BlockSpec((bm, np_out[-1]), lambda i: (i, 0)),
        scratch_shapes=[pltpu.VMEM((bm, scratch_cols), jnp.bfloat16)],
        compiler_params=pltpu.CompilerParams(
            dimension_semantics=("parallel",),
            vmem_limit_bytes=_vmem_limit_bytes(),
        ),
    )(xp, *wth_list, *wtx_list, *b_list)

    return out[:B, :n_out_last]


# ------------------------------ references ---------------------------------- #

def gdnn_forward_ref(X, layers):
    """Pure-jnp f32 reference of the module forward (dense weights, no padding)."""
    B = X.shape[0]
    out1 = jnp.transpose(X, (0, 2, 1)).reshape(B, -1)
    W0, b0 = layers[0]
    out2 = out1 @ W0.T + b0
    bias = b0
    for (W, b) in layers[1:]:
        h = jnp.maximum(out2, 0.0) - (out2 - bias) / 2
        out1 = jnp.concatenate([h, out1], axis=1)
        out2 = out1 @ W.T + b
        bias = b
    return out2


def gdnn_forward_ref_bf16(X, layers):
    """Emulates the kernel's mixed precision: bf16 weights/activations, f32 accumulation."""
    B = X.shape[0]
    x0 = jnp.transpose(X, (0, 2, 1)).reshape(B, -1).astype(jnp.bfloat16)
    h_cat = None
    for l, (W, b) in enumerate(layers):
        Wb = W.astype(jnp.bfloat16)
        kh = 0 if h_cat is None else h_cat.shape[1]
        z = jnp.dot(x0, Wb[:, kh:].T, preferred_element_type=jnp.float32)
        if h_cat is not None:
            z = z + jnp.dot(h_cat, Wb[:, :kh].T, preferred_element_type=jnp.float32)
        if l < len(layers) - 1:
            h = (jnp.maximum(z + b, 0.0) - 0.5 * z).astype(jnp.bfloat16)
            h_cat = h if h_cat is None else jnp.concatenate([h, h_cat], axis=1)
        else:
            return z + b


# ----------------------------------- main ----------------------------------- #

if __name__ == "__main__":
    key = jax.random.PRNGKey(0)
    kx, kp = jax.random.split(key)

    # small synthetic config
    B, C0, F0 = 2, 4, 8                       # X: (batch, input_channels, input_features)
    in_channels = (4, 6, 5)                   # in_channels[l] = out_channels[l-1]
    out_channels = (6, 5, 3)
    irrep_degrees = [[8, 4], [8], [1]]        # last layer: trivial rep -> (B, out_channels)

    X = jax.random.normal(kx, (B, C0, F0), jnp.float32)
    layers = build_gdnn_params(kp, in_channels, out_channels, irrep_degrees,
                               input_degree=F0)

    # pack (split + transpose + lane-pad + bf16) the equivariant weights ONCE
    wth_list, wtx_list, b_list = pack_gdnn_params(layers, k0=C0 * F0)
    n_out_last = out_channels[-1] * sum(irrep_degrees[-1])

    try:
        out = jax.block_until_ready(
            gdnn_forward_pallas(X, wth_list, wtx_list, b_list,
                                n_out_last=n_out_last, single_buffer=True))
    except Exception:
        # fallback if this JAX build rejects pl.Buffered(buffer_count=1) on a BlockSpec
        out = jax.block_until_ready(
            gdnn_forward_pallas(X, wth_list, wtx_list, b_list,
                                n_out_last=n_out_last, single_buffer=False))

    ref_bf16 = gdnn_forward_ref_bf16(X, layers)   # same mixed precision as the kernel
    ref_f32 = gdnn_forward_ref(X, layers)         # module semantics in f32

    assert out.shape == (B, n_out_last), out.shape
    assert bool(jnp.allclose(out, ref_bf16, atol=2e-3, rtol=2e-3)), \
        "mismatch vs bf16-emulated reference"
    assert bool(jnp.allclose(out, ref_f32, atol=6e-2, rtol=6e-2)), \
        "mismatch vs f32 reference"

    print("KERNEL_OK")
</pallas_src>

<mosaic_0001>
module attributes {stable_mosaic.version = 11 : i64} {
  func.func @kernel(%arg0: i32, %arg1: memref<16x128xbf16, #tpu.memory_space<vmem>>, %arg2: memref<128x128xbf16, #tpu.memory_space<vmem>>, %arg3: memref<256x128xbf16, #tpu.memory_space<vmem>>, %arg4: memref<128x128xbf16, #tpu.memory_space<vmem>>, %arg5: memref<128x128xbf16, #tpu.memory_space<vmem>>, %arg6: memref<128x128xbf16, #tpu.memory_space<vmem>>, %arg7: memref<1x128xf32, #tpu.memory_space<vmem>>, %arg8: memref<1x128xf32, #tpu.memory_space<vmem>>, %arg9: memref<1x128xf32, #tpu.memory_space<vmem>>, %arg10: memref<16x128xf32, #tpu.memory_space<vmem>>, %arg11: memref<16x256xbf16, #tpu.memory_space<vmem>>) attributes {dimension_semantics = [#tpu.dimension_semantics<parallel>], iteration_bounds = array<i64: 1>, scalar_prefetch = 0 : i64, scratch_operands = 1 : i64, tpu.core_type = #tpu.core_type<tc>, window_params = [{transform_indices = @transform_0, window_bounds = array<i64: 16, 128>}, {pipeline_mode = #tpu.pipeline_mode<synchronous>, transform_indices = @transform_1, window_bounds = array<i64: 128, 128>}, {pipeline_mode = #tpu.pipeline_mode<synchronous>, transform_indices = @transform_2, window_bounds = array<i64: 256, 128>}, {pipeline_mode = #tpu.pipeline_mode<synchronous>, transform_indices = @transform_3, window_bounds = array<i64: 128, 128>}, {pipeline_mode = #tpu.pipeline_mode<synchronous>, transform_indices = @transform_4, window_bounds = array<i64: 128, 128>}, {pipeline_mode = #tpu.pipeline_mode<synchronous>, transform_indices = @transform_5, window_bounds = array<i64: 128, 128>}, {pipeline_mode = #tpu.pipeline_mode<synchronous>, transform_indices = @transform_6, window_bounds = array<i64: 1, 128>}, {pipeline_mode = #tpu.pipeline_mode<synchronous>, transform_indices = @transform_7, window_bounds = array<i64: 1, 128>}, {pipeline_mode = #tpu.pipeline_mode<synchronous>, transform_indices = @transform_8, window_bounds = array<i64: 1, 128>}, {transform_indices = @transform_9, window_bounds = array<i64: 16, 128>}]} {
    %c0 = arith.constant 0 : index
    %c0_0 = arith.constant 0 : index
    %0 = vector.load %arg1[%c0, %c0_0] : memref<16x128xbf16, #tpu.memory_space<vmem>>, vector<16x128xbf16>
    %c0_1 = arith.constant 0 : index
    %c0_2 = arith.constant 0 : index
    %1 = vector.load %arg4[%c0_1, %c0_2] : memref<128x128xbf16, #tpu.memory_space<vmem>>, vector<128x128xbf16>
    %cst = arith.constant dense<0.000000e+00> : vector<16x128xf32>
    %2 = tpu.matmul %0, %1, %cst {dimension_numbers = #tpu.dot_dimension_numbers<[1], [0], [0], [1], [0, 0, 1, 1], [], []>} : vector<16x128xbf16>, vector<128x128xbf16>, vector<16x128xf32> -> vector<16x128xf32>
    %c0_3 = arith.constant 0 : index
    %c0_4 = arith.constant 0 : index
    %3 = vector.load %arg7[%c0_3, %c0_4] : memref<1x128xf32, #tpu.memory_space<vmem>>, vector<1x128xf32>
    %4 = vector.broadcast %3 : vector<1x128xf32> to vector<16x128xf32>
    %5 = arith.addf %2, %4 : vector<16x128xf32>
    %cst_5 = arith.constant 0.000000e+00 : f32
    %6 = vector.broadcast %cst_5 : f32 to vector<16x128xf32>
    %7 = arith.maximumf %5, %6 : vector<16x128xf32>
    %cst_6 = arith.constant 5.000000e-01 : f32
    %8 = vector.broadcast %cst_6 : f32 to vector<16x128xf32>
    %9 = arith.mulf %8, %2 : vector<16x128xf32>
    %10 = arith.subf %7, %9 : vector<16x128xf32>
    %11 = arith.truncf %10 : vector<16x128xf32> to vector<16x128xbf16>
    %c0_7 = arith.constant 0 : index
    %c128 = arith.constant 128 : index
    %12 = vector.load %arg11[%c0_7, %c128] : memref<16x256xbf16, #tpu.memory_space<vmem>>, vector<16x128xbf16>
    tpu.vector_store %arg11[%c0_7, %c128], %11 {strides = array<i32>} : memref<16x256xbf16, #tpu.memory_space<vmem>>, vector<16x128xbf16>,
    %c0_8 = arith.constant 0 : index
    %c0_9 = arith.constant 0 : index
    %13 = vector.load %arg5[%c0_8, %c0_9] : memref<128x128xbf16, #tpu.memory_space<vmem>>, vector<128x128xbf16>
    %cst_10 = arith.constant dense<0.000000e+00> : vector<16x128xf32>
    %14 = tpu.matmul %0, %13, %cst_10 {dimension_numbers = #tpu.dot_dimension_numbers<[1], [0], [0], [1], [0, 0, 1, 1], [], []>} : vector<16x128xbf16>, vector<128x128xbf16>, vector<16x128xf32> -> vector<16x128xf32>
    %c0_11 = arith.constant 0 : index
    %c128_12 = arith.constant 128 : index
    %15 = vector.load %arg11[%c0_11, %c128_12] : memref<16x256xbf16, #tpu.memory_space<vmem>>, vector<16x128xbf16>
    %c0_13 = arith.constant 0 : index
    %c0_14 = arith.constant 0 : index
    %16 = vector.load %arg2[%c0_13, %c0_14] : memref<128x128xbf16, #tpu.memory_space<vmem>>, vector<128x128xbf16>
    %cst_15 = arith.constant dense<0.000000e+00> : vector<16x128xf32>
    %17 = tpu.matmul %15, %16, %cst_15 {dimension_numbers = #tpu.dot_dimension_numbers<[1], [0], [0], [1], [0, 0, 1, 1], [], []>} : vector<16x128xbf16>, vector<128x128xbf16>, vector<16x128xf32> -> vector<16x128xf32>
    %18 = arith.addf %14, %17 : vector<16x128xf32>
    %c0_16 = arith.constant 0 : index
    %c0_17 = arith.constant 0 : index
    %19 = vector.load %arg8[%c0_16, %c0_17] : memref<1x128xf32, #tpu.memory_space<vmem>>, vector<1x128xf32>
    %20 = vector.broadcast %19 : vector<1x128xf32> to vector<16x128xf32>
    %21 = arith.addf %18, %20 : vector<16x128xf32>
    %cst_18 = arith.constant 0.000000e+00 : f32
    %22 = vector.broadcast %cst_18 : f32 to vector<16x128xf32>
    %23 = arith.maximumf %21, %22 : vector<16x128xf32>
    %cst_19 = arith.constant 5.000000e-01 : f32
    %24 = vector.broadcast %cst_19 : f32 to vector<16x128xf32>
    %25 = arith.mulf %24, %18 : vector<16x128xf32>
    %26 = arith.subf %23, %25 : vector<16x128xf32>
    %27 = arith.truncf %26 : vector<16x128xf32> to vector<16x128xbf16>
    %c0_20 = arith.constant 0 : index
    %c0_21 = arith.constant 0 : index
    %28 = vector.load %arg11[%c0_20, %c0_21] : memref<16x256xbf16, #tpu.memory_space<vmem>>, vector<16x128xbf16>
    tpu.vector_store %arg11[%c0_20, %c0_21], %27 {strides = array<i32>} : memref<16x256xbf16, #tpu.memory_space<vmem>>, vector<16x128xbf16>,
    %c0_22 = arith.constant 0 : index
    %c0_23 = arith.constant 0 : index
    %29 = vector.load %arg6[%c0_22, %c0_23] : memref<128x128xbf16, #tpu.memory_space<vmem>>, vector<128x128xbf16>
    %cst_24 = arith.constant dense<0.000000e+00> : vector<16x128xf32>
    %30 = tpu.matmul %0, %29, %cst_24 {dimension_numbers = #tpu.dot_dimension_numbers<[1], [0], [0], [1], [0, 0, 1, 1], [], []>} : vector<16x128xbf16>, vector<128x128xbf16>, vector<16x128xf32> -> vector<16x128xf32>
    %c0_25 = arith.constant 0 : index
    %c0_26 = arith.constant 0 : index
    %31 = vector.load %arg11[%c0_25, %c0_26] : memref<16x256xbf16, #tpu.memory_space<vmem>>, vector<16x256xbf16>
    %c0_27 = arith.constant 0 : index
    %c0_28 = arith.constant 0 : index
    %32 = vector.load %arg3[%c0_27, %c0_28] : memref<256x128xbf16, #tpu.memory_space<vmem>>, vector<256x128xbf16>
    %cst_29 = arith.constant dense<0.000000e+00> : vector<16x128xf32>
    %33 = tpu.matmul %31, %32, %cst_29 {dimension_numbers = #tpu.dot_dimension_numbers<[1], [0], [0], [1], [0, 0, 1, 1], [], []>} : vector<16x256xbf16>, vector<256x128xbf16>, vector<16x128xf32> -> vector<16x128xf32>
    %34 = arith.addf %30, %33 : vector<16x128xf32>
    %c0_30 = arith.constant 0 : index
    %c0_31 = arith.constant 0 : index
    %35 = vector.load %arg9[%c0_30, %c0_31] : memref<1x128xf32, #tpu.memory_space<vmem>>, vector<1x128xf32>
    %36 = vector.broadcast %35 : vector<1x128xf32> to vector<16x128xf32>
    %37 = arith.addf %34, %36 : vector<16x128xf32>
    %c0_32 = arith.constant 0 : index
    %c0_33 = arith.constant 0 : index
    %38 = vector.load %arg10[%c0_32, %c0_33] : memref<16x128xf32, #tpu.memory_space<vmem>>, vector<16x128xf32>
    tpu.vector_store %arg10[%c0_32, %c0_33], %37 {strides = array<i32>} : memref<16x128xf32, #tpu.memory_space<vmem>>, vector<16x128xf32>,
    return
  }
  func.func @transform_0(%arg0: i32) -> (i32, i32) {
    %c0_i32 = arith.constant 0 : i32
    %c0_i32_0 = arith.constant 0 : i32
    return %arg0, %c0_i32 : i32, i32
  }
  func.func @transform_1(%arg0: i32) -> (i32, i32) {
    %c0_i32 = arith.constant 0 : i32
    %c0_i32_0 = arith.constant 0 : i32
    %c0_i32_1 = arith.constant 0 : i32
    return %c0_i32, %c0_i32_0 : i32, i32
  }
  func.func @transform_2(%arg0: i32) -> (i32, i32) {
    %c0_i32 = arith.constant 0 : i32
    %c0_i32_0 = arith.constant 0 : i32
    %c0_i32_1 = arith.constant 0 : i32
    return %c0_i32, %c0_i32_0 : i32, i32
  }
  func.func @transform_3(%arg0: i32) -> (i32, i32) {
    %c0_i32 = arith.constant 0 : i32
    %c0_i32_0 = arith.constant 0 : i32
    %c0_i32_1 = arith.constant 0 : i32
    return %c0_i32, %c0_i32_0 : i32, i32
  }
  func.func @transform_4(%arg0: i32) -> (i32, i32) {
    %c0_i32 = arith.constant 0 : i32
    %c0_i32_0 = arith.constant 0 : i32
    %c0_i32_1 = arith.constant 0 : i32
    return %c0_i32, %c0_i32_0 : i32, i32
  }
  func.func @transform_5(%arg0: i32) -> (i32, i32) {
    %c0_i32 = arith.constant 0 : i32
    %c0_i32_0 = arith.constant 0 : i32
    %c0_i32_1 = arith.constant 0 : i32
    return %c0_i32, %c0_i32_0 : i32, i32
  }
  func.func @transform_6(%arg0: i32) -> (i32, i32) {
    %c0_i32 = arith.constant 0 : i32
    %c0_i32_0 = arith.constant 0 : i32
    %c0_i32_1 = arith.constant 0 : i32
    return %c0_i32, %c0_i32_0 : i32, i32
  }
  func.func @transform_7(%arg0: i32) -> (i32, i32) {
    %c0_i32 = arith.constant 0 : i32
    %c0_i32_0 = arith.constant 0 : i32
    %c0_i32_1 = arith.constant 0 : i32
    return %c0_i32, %c0_i32_0 : i32, i32
  }
  func.func @transform_8(%arg0: i32) -> (i32, i32) {
    %c0_i32 = arith.constant 0 : i32
    %c0_i32_0 = arith.constant 0 : i32
    %c0_i32_1 = arith.constant 0 : i32
    return %c0_i32, %c0_i32_0 : i32, i32
  }
  func.func @transform_9(%arg0: i32) -> (i32, i32) {
    %c0_i32 = arith.constant 0 : i32
    %c0_i32_0 = arith.constant 0 : i32
    return %arg0, %c0_i32 : i32, i32
  }
}

module attributes {stable_mosaic.version = 11 : i64} {
  func.func @kernel(%arg0: i32, %arg1: memref<16x128xbf16, #tpu.memory_space<vmem>>, %arg2: memref<128x128xbf16, #tpu.memory_space<vmem>>, %arg3: memref<256x128xbf16, #tpu.memory_space<vmem>>, %arg4: memref<128x128xbf16, #tpu.memory_space<vmem>>, %arg5: memref<128x128xbf16, #tpu.memory_space<vmem>>, %arg6: memref<128x128xbf16, #tpu.memory_space<vmem>>, %arg7: memref<1x128xf32, #tpu.memory_space<vmem>>, %arg8: memref<1x128xf32, #tpu.memory_space<vmem>>, %arg9: memref<1x128xf32, #tpu.memory_space<vmem>>, %arg10: memref<16x128xf32, #tpu.memory_space<vmem>>, %arg11: memref<16x256xbf16, #tpu.memory_space<vmem>>) attributes {dimension_semantics = [#tpu.dimension_semantics<parallel>], iteration_bounds = array<i64: 1>, scalar_prefetch = 0 : i64, scratch_operands = 1 : i64, tpu.core_type = #tpu.core_type<tc>, window_params = [{transform_indices = @transform_0, window_bounds = array<i64: 16, 128>}, {pipeline_mode = #tpu.pipeline_mode<synchronous>, transform_indices = @transform_1, window_bounds = array<i64: 128, 128>}, {pipeline_mode = #tpu.pipeline_mode<synchronous>, transform_indices = @transform_2, window_bounds = array<i64: 256, 128>}, {pipeline_mode = #tpu.pipeline_mode<synchronous>, transform_indices = @transform_3, window_bounds = array<i64: 128, 128>}, {pipeline_mode = #tpu.pipeline_mode<synchronous>, transform_indices = @transform_4, window_bounds = array<i64: 128, 128>}, {pipeline_mode = #tpu.pipeline_mode<synchronous>, transform_indices = @transform_5, window_bounds = array<i64: 128, 128>}, {pipeline_mode = #tpu.pipeline_mode<synchronous>, transform_indices = @transform_6, window_bounds = array<i64: 1, 128>}, {pipeline_mode = #tpu.pipeline_mode<synchronous>, transform_indices = @transform_7, window_bounds = array<i64: 1, 128>}, {pipeline_mode = #tpu.pipeline_mode<synchronous>, transform_indices = @transform_8, window_bounds = array<i64: 1, 128>}, {transform_indices = @transform_9, window_bounds = array<i64: 16, 128>}]} {
    %c0 = arith.constant 0 : index
    %c0_0 = arith.constant 0 : index
    %0 = vector.load %arg1[%c0, %c0_0] : memref<16x128xbf16, #tpu.memory_space<vmem>>, vector<16x128xbf16>
    %c0_1 = arith.constant 0 : index
    %c0_2 = arith.constant 0 : index
    %1 = vector.load %arg4[%c0_1, %c0_2] : memref<128x128xbf16, #tpu.memory_space<vmem>>, vector<128x128xbf16>
    %cst = arith.constant dense<0.000000e+00> : vector<16x128xf32>
    %2 = tpu.matmul %0, %1, %cst {dimension_numbers = #tpu.dot_dimension_numbers<[1], [0], [0], [1], [0, 0, 1, 1], [], []>} : vector<16x128xbf16>, vector<128x128xbf16>, vector<16x128xf32> -> vector<16x128xf32>
    %c0_3 = arith.constant 0 : index
    %c0_4 = arith.constant 0 : index
    %3 = vector.load %arg7[%c0_3, %c0_4] : memref<1x128xf32, #tpu.memory_space<vmem>>, vector<1x128xf32>
    %4 = vector.broadcast %3 : vector<1x128xf32> to vector<16x128xf32>
    %5 = arith.addf %2, %4 : vector<16x128xf32>
    %cst_5 = arith.constant 0.000000e+00 : f32
    %6 = vector.broadcast %cst_5 : f32 to vector<16x128xf32>
    %7 = arith.maximumf %5, %6 : vector<16x128xf32>
    %cst_6 = arith.constant 5.000000e-01 : f32
    %8 = vector.broadcast %cst_6 : f32 to vector<16x128xf32>
    %9 = arith.mulf %8, %2 : vector<16x128xf32>
    %10 = arith.subf %7, %9 : vector<16x128xf32>
    %11 = arith.truncf %10 : vector<16x128xf32> to vector<16x128xbf16>
    %c0_7 = arith.constant 0 : index
    %c128 = arith.constant 128 : index
    %12 = vector.load %arg11[%c0_7, %c128] : memref<16x256xbf16, #tpu.memory_space<vmem>>, vector<16x128xbf16>
    tpu.vector_store %arg11[%c0_7, %c128], %11 {strides = array<i32>} : memref<16x256xbf16, #tpu.memory_space<vmem>>, vector<16x128xbf16>,
    %c0_8 = arith.constant 0 : index
    %c0_9 = arith.constant 0 : index
    %13 = vector.load %arg5[%c0_8, %c0_9] : memref<128x128xbf16, #tpu.memory_space<vmem>>, vector<128x128xbf16>
    %cst_10 = arith.constant dense<0.000000e+00> : vector<16x128xf32>
    %14 = tpu.matmul %0, %13, %cst_10 {dimension_numbers = #tpu.dot_dimension_numbers<[1], [0], [0], [1], [0, 0, 1, 1], [], []>} : vector<16x128xbf16>, vector<128x128xbf16>, vector<16x128xf32> -> vector<16x128xf32>
    %c0_11 = arith.constant 0 : index
    %c128_12 = arith.constant 128 : index
    %15 = vector.load %arg11[%c0_11, %c128_12] : memref<16x256xbf16, #tpu.memory_space<vmem>>, vector<16x128xbf16>
    %c0_13 = arith.constant 0 : index
    %c0_14 = arith.constant 0 : index
    %16 = vector.load %arg2[%c0_13, %c0_14] : memref<128x128xbf16, #tpu.memory_space<vmem>>, vector<128x128xbf16>
    %cst_15 = arith.constant dense<0.000000e+00> : vector<16x128xf32>
    %17 = tpu.matmul %15, %16, %cst_15 {dimension_numbers = #tpu.dot_dimension_numbers<[1], [0], [0], [1], [0, 0, 1, 1], [], []>} : vector<16x128xbf16>, vector<128x128xbf16>, vector<16x128xf32> -> vector<16x128xf32>
    %18 = arith.addf %14, %17 : vector<16x128xf32>
    %c0_16 = arith.constant 0 : index
    %c0_17 = arith.constant 0 : index
    %19 = vector.load %arg8[%c0_16, %c0_17] : memref<1x128xf32, #tpu.memory_space<vmem>>, vector<1x128xf32>
    %20 = vector.broadcast %19 : vector<1x128xf32> to vector<16x128xf32>
    %21 = arith.addf %18, %20 : vector<16x128xf32>
    %cst_18 = arith.constant 0.000000e+00 : f32
    %22 = vector.broadcast %cst_18 : f32 to vector<16x128xf32>
    %23 = arith.maximumf %21, %22 : vector<16x128xf32>
    %cst_19 = arith.constant 5.000000e-01 : f32
    %24 = vector.broadcast %cst_19 : f32 to vector<16x128xf32>
    %25 = arith.mulf %24, %18 : vector<16x128xf32>
    %26 = arith.subf %23, %25 : vector<16x128xf32>
    %27 = arith.truncf %26 : vector<16x128xf32> to vector<16x128xbf16>
    %c0_20 = arith.constant 0 : index
    %c0_21 = arith.constant 0 : index
    %28 = vector.load %arg11[%c0_20, %c0_21] : memref<16x256xbf16, #tpu.memory_space<vmem>>, vector<16x128xbf16>
    tpu.vector_store %arg11[%c0_20, %c0_21], %27 {strides = array<i32>} : memref<16x256xbf16, #tpu.memory_space<vmem>>, vector<16x128xbf16>,
    %c0_22 = arith.constant 0 : index
    %c0_23 = arith.constant 0 : index
    %29 = vector.load %arg6[%c0_22, %c0_23] : memref<128x128xbf16, #tpu.memory_space<vmem>>, vector<128x128xbf16>
    %cst_24 = arith.constant dense<0.000000e+00> : vector<16x128xf32>
    %30 = tpu.matmul %0, %29, %cst_24 {dimension_numbers = #tpu.dot_dimension_numbers<[1], [0], [0], [1], [0, 0, 1, 1], [], []>} : vector<16x128xbf16>, vector<128x128xbf16>, vector<16x128xf32> -> vector<16x128xf32>
    %c0_25 = arith.constant 0 : index
    %c0_26 = arith.constant 0 : index
    %31 = vector.load %arg11[%c0_25, %c0_26] : memref<16x256xbf16, #tpu.memory_space<vmem>>, vector<16x256xbf16>
    %c0_27 = arith.constant 0 : index
    %c0_28 = arith.constant 0 : index
    %32 = vector.load %arg3[%c0_27, %c0_28] : memref<256x128xbf16, #tpu.memory_space<vmem>>, vector<256x128xbf16>
    %cst_29 = arith.constant dense<0.000000e+00> : vector<16x128xf32>
    %33 = tpu.matmul %31, %32, %cst_29 {dimension_numbers = #tpu.dot_dimension_numbers<[1], [0], [0], [1], [0, 0, 1, 1], [], []>} : vector<16x256xbf16>, vector<256x128xbf16>, vector<16x128xf32> -> vector<16x128xf32>
    %34 = arith.addf %30, %33 : vector<16x128xf32>
    %c0_30 = arith.constant 0 : index
    %c0_31 = arith.constant 0 : index
    %35 = vector.load %arg9[%c0_30, %c0_31] : memref<1x128xf32, #tpu.memory_space<vmem>>, vector<1x128xf32>
    %36 = vector.broadcast %35 : vector<1x128xf32> to vector<16x128xf32>
    %37 = arith.addf %34, %36 : vector<16x128xf32>
    %c0_32 = arith.constant 0 : index
    %c0_33 = arith.constant 0 : index
    %38 = vector.load %arg10[%c0_32, %c0_33] : memref<16x128xf32, #tpu.memory_space<vmem>>, vector<16x128xf32>
    tpu.vector_store %arg10[%c0_32, %c0_33], %37 {strides = array<i32>} : memref<16x128xf32, #tpu.memory_space<vmem>>, vector<16x128xf32>,
    return
  }
  func.func @transform_0(%arg0: i32) -> (i32, i32) {
    %c0_i32 = arith.constant 0 : i32
    %c0_i32_0 = arith.constant 0 : i32
    return %arg0, %c0_i32 : i32, i32
  }
  func.func @transform_1(%arg0: i32) -> (i32, i32) {
    %c0_i32 = arith.constant 0 : i32
    %c0_i32_0 = arith.constant 0 : i32
    %c0_i32_1 = arith.constant 0 : i32
    return %c0_i32, %c0_i32_0 : i32, i32
  }
  func.func @transform_2(%arg0: i32) -> (i32, i32) {
    %c0_i32 = arith.constant 0 : i32
    %c0_i32_0 = arith.constant 0 : i32
    %c0_i32_1 = arith.constant 0 : i32
    return %c0_i32, %c0_i32_0 : i32, i32
  }
  func.func @transform_3(%arg0: i32) -> (i32, i32) {
    %c0_i32 = arith.constant 0 : i32
    %c0_i32_0 = arith.constant 0 : i32
    %c0_i32_1 = arith.constant 0 : i32
    return %c0_i32, %c0_i32_0 : i32, i32
  }
  func.func @transform_4(%arg0: i32) -> (i32, i32) {
    %c0_i32 = arith.constant 0 : i32
    %c0_i32_0 = arith.constant 0 : i32
    %c0_i32_1 = arith.constant 0 : i32
    return %c0_i32, %c0_i32_0 : i32, i32
  }
  func.func @transform_5(%arg0: i32) -> (i32, i32) {
    %c0_i32 = arith.constant 0 : i32
    %c0_i32_0 = arith.constant 0 : i32
    %c0_i32_1 = arith.constant 0 : i32
    return %c0_i32, %c0_i32_0 : i32, i32
  }
  func.func @transform_6(%arg0: i32) -> (i32, i32) {
    %c0_i32 = arith.constant 0 : i32
    %c0_i32_0 = arith.constant 0 : i32
    %c0_i32_1 = arith.constant 0 : i32
    return %c0_i32, %c0_i32_0 : i32, i32
  }
  func.func @transform_7(%arg0: i32) -> (i32, i32) {
    %c0_i32 = arith.constant 0 : i32
    %c0_i32_0 = arith.constant 0 : i32
    %c0_i32_1 = arith.constant 0 : i32
    return %c0_i32, %c0_i32_0 : i32, i32
  }
  func.func @transform_8(%arg0: i32) -> (i32, i32) {
    %c0_i32 = arith.constant 0 : i32
    %c0_i32_0 = arith.constant 0 : i32
    %c0_i32_1 = arith.constant 0 : i32
    return %c0_i32, %c0_i32_0 : i32, i32
  }
  func.func @transform_9(%arg0: i32) -> (i32, i32) {
    %c0_i32 = arith.constant 0 : i32
    %c0_i32_0 = arith.constant 0 : i32
    return %arg0, %c0_i32 : i32, i32
  }
}

</mosaic_0001>

<llo_original>
// kernel: gdnn_forward_pallas.1
$region0: #{gdnn_forward_pallas.1}
  #allocation0 [shape = 'u32[]', space=smem, size = 0x4, offset = 0x4, fixed_abs, tag = 'smem constant byte address 0x4 - core index']
  #allocation1 [shape = 'u32[144,128]{1,0:T(1,128)}', space=vmem, size = 0x12000, scoped, tag = 'internal scratch']
  #allocation2 [shape = 'bf16[16,256]{1,0:T(8,128)(2,1)}', space=vmem, size = 0x2000, scoped, tag = 'scratch operand']
  %s0 = inlined_call_operand.vmem [shape: bf16[16,128], index: 0, kind: input, shape index: {}]
  %s1 = inlined_call_operand.hbm [shape: bf16[128,128], index: 1, kind: input, shape index: {}]
  %s2 = inlined_call_operand.hbm [shape: bf16[256,128], index: 2, kind: input, shape index: {}]
  %s3 = inlined_call_operand.hbm [shape: bf16[128,128], index: 3, kind: input, shape index: {}]
  %s4 = inlined_call_operand.hbm [shape: bf16[128,128], index: 4, kind: input, shape index: {}]
  %s5 = inlined_call_operand.hbm [shape: bf16[128,128], index: 5, kind: input, shape index: {}]
  %s6 = inlined_call_operand.vmem [shape: f32[1,128], index: 6, kind: input, shape index: {}]
  %s7 = inlined_call_operand.vmem [shape: f32[1,128], index: 7, kind: input, shape index: {}]
  %s8 = inlined_call_operand.vmem [shape: f32[1,128], index: 8, kind: input, shape index: {}]
  %s9 = inlined_call_operand.vmem [shape: f32[16,128], index: 9, kind: output, shape index: {}]
  %s10 = sld [smem:[#allocation0]]
  $region66: #{gdnn_forward_pallas.1} parent=0
    _
  %s12 = ssub.s32 1, %s10
  %s13 = scalar_select 0, %s12, %s10
  $region1: #{gdnn_forward_pallas.1} parent=0
    #allocation3 [shape = 'u8[32768]{0}', space=vmem, size = 0x8000, scoped, tag = 'input window, operand 1, single buffered']
    #allocation4 [shape = 's32[1]{0}', space=sflag, size = 0x4, scoped, tag = 'scoped memory for gdnn_forward_pallas.1']
    #allocation5 [shape = 'u8[65536]{0}', space=vmem, size = 0x10000, scoped, tag = 'input window, operand 2, single buffered']
    #allocation6 [shape = 's32[1]{0}', space=sflag, size = 0x4, scoped, tag = 'scoped memory for gdnn_forward_pallas.1']
    #allocation7 [shape = 'u8[32768]{0}', space=vmem, size = 0x8000, scoped, tag = 'input window, operand 3, single buffered']
    #allocation8 [shape = 'u8[32768]{0}', space=vmem, size = 0x8000, scoped, tag = 'input window, operand 4, single buffered']
    #allocation9 [shape = 's32[1]{0}', space=sflag, size = 0x4, scoped, tag = 'scoped memory for gdnn_forward_pallas.1']
    #allocation10 [shape = 'u8[32768]{0}', space=vmem, size = 0x8000, scoped, tag = 'input window, operand 5, single buffered']
    %14 = vsyncpa [#allocation4], 0
    %15 = vsyncpa [#allocation6], 0
    %16 = vsyncpa [#allocation9], 0
    // Predicated region
    $region2: #{gdnn_forward_pallas.1} parent=1 // pred_check
      _
    $region3: #{gdnn_forward_pallas.1} parent=1 // pred_check_branch
      %18 = sbr.rel (0) target = $region5
    $region4: #{gdnn_forward_pallas.1} parent=1 // pred_region
      _
    $region5: #{gdnn_forward_pallas.1} parent=1 // pred_fallthru
      _
    // Predicated region
    $region6: #{gdnn_forward_pallas.1} parent=1 // pred_check
      _
    $region7: #{gdnn_forward_pallas.1} parent=1 // pred_check_branch
      %20 = sbr.rel (0) target = $region9
    $region8: #{gdnn_forward_pallas.1} parent=1 // pred_region
      %s22 = ssub.s32 1024, 1024
      %23 = vsyncadd [#allocation4], %s22
      %s24 = sshll.u32 [#allocation3], 4
      %s25 = int_to_ptr.vmem [resolvable:$true] %s24
      %30 = dma.hbm_to_vmem [thread:$0]  %s1, 1024, %s25, [#allocation4], 64, 64, 4
    $region9: #{gdnn_forward_pallas.1} parent=1 // pred_fallthru
      _
    // Predicated region
    $region10: #{gdnn_forward_pallas.1} parent=1 // pred_check
      _
    $region11: #{gdnn_forward_pallas.1} parent=1 // pred_check_branch
      %32 = sbr.rel (0) target = $region13
    $region12: #{gdnn_forward_pallas.1} parent=1 // pred_region
      %s34 = ssub.s32 2048, 2048
      %35 = vsyncadd [#allocation6], %s34
      %s36 = sshll.u32 [#allocation5], 4
      %s37 = int_to_ptr.vmem [resolvable:$true] %s36
      %42 = dma.hbm_to_vmem [thread:$0]  %s2, 2048, %s37, [#allocation6], 64, 64, 4
    $region13: #{gdnn_forward_pallas.1} parent=1 // pred_fallthru
      _
    // Predicated region
    $region14: #{gdnn_forward_pallas.1} parent=1 // pred_check
      _
    $region15: #{gdnn_forward_pallas.1} parent=1 // pred_check_branch
      %44 = sbr.rel (0) target = $region17
    $region16: #{gdnn_forward_pallas.1} parent=1 // pred_region
      %s46 = ssub.s32 1024, 1024
      %47 = vsyncadd [#allocation6], %s46
      %s48 = sshll.u32 [#allocation7], 4
      %s49 = int_to_ptr.vmem [resolvable:$true] %s48
      %54 = dma.hbm_to_vmem [thread:$0]  %s3, 1024, %s49, [#allocation6], 64, 64, 4
    $region17: #{gdnn_forward_pallas.1} parent=1 // pred_fallthru
      _
    // Predicated region
    $region18: #{gdnn_forward_pallas.1} parent=1 // pred_check
      _
    $region19: #{gdnn_forward_pallas.1} parent=1 // pred_check_branch
      %56 = sbr.rel (0) target = $region21
    $region20: #{gdnn_forward_pallas.1} parent=1 // pred_region
      %s58 = ssub.s32 1024, 1024
      %59 = vsyncadd [#allocation9], %s58
      %s60 = sshll.u32 [#allocation8], 4
      %s61 = int_to_ptr.vmem [resolvable:$true] %s60
      %66 = dma.hbm_to_vmem [thread:$0]  %s4, 1024, %s61, [#allocation9], 64, 64, 4
    $region21: #{gdnn_forward_pallas.1} parent=1 // pred_fallthru
      _
    // Predicated region
    $region22: #{gdnn_forward_pallas.1} parent=1 // pred_check
      _
    $region23: #{gdnn_forward_pallas.1} parent=1 // pred_check_branch
      %68 = sbr.rel (0) target = $region25
    $region24: #{gdnn_forward_pallas.1} parent=1 // pred_region
      %s70 = ssub.s32 1024, 1024
      %71 = vsyncadd [#allocation9], %s70
      %s72 = sshll.u32 [#allocation10], 4
      %s73 = int_to_ptr.vmem [resolvable:$true] %s72
      %78 = dma.hbm_to_vmem [thread:$0]  %s5, 1024, %s73, [#allocation9], 64, 64, 4
    $region25: #{gdnn_forward_pallas.1} parent=1 // pred_fallthru
      _
    // Predicated region
    $region26: #{gdnn_forward_pallas.1} parent=1 // pred_check
      _
    $region27: #{gdnn_forward_pallas.1} parent=1 // pred_check_branch
      %80 = sbr.rel (0) target = $region29
    $region28: #{gdnn_forward_pallas.1} parent=1 // pred_region
      _
    $region29: #{gdnn_forward_pallas.1} parent=1 // pred_fallthru
      _
    // Predicated region
    $region30: #{gdnn_forward_pallas.1} parent=1 // pred_check
      _
    $region31: #{gdnn_forward_pallas.1} parent=1 // pred_check_branch
      %82 = sbr.rel (0) target = $region33
    $region32: #{gdnn_forward_pallas.1} parent=1 // pred_region
      _
    $region33: #{gdnn_forward_pallas.1} parent=1 // pred_fallthru
      _
    // Predicated region
    $region34: #{gdnn_forward_pallas.1} parent=1 // pred_check
      _
    $region35: #{gdnn_forward_pallas.1} parent=1 // pred_check_branch
      %84 = sbr.rel (0) target = $region37
    $region36: #{gdnn_forward_pallas.1} parent=1 // pred_region
      _
    $region37: #{gdnn_forward_pallas.1} parent=1 // pred_fallthru
      _
    // Predicated region
    $region38: #{gdnn_forward_pallas.1} parent=1 // pred_check
      _
    $region39: #{gdnn_forward_pallas.1} parent=1 // pred_check_branch
      %86 = sbr.rel (0) target = $region41
    $region40: #{gdnn_forward_pallas.1} parent=1 // pred_region
      %87 = dma.done [#allocation4], 1024
    $region41: #{gdnn_forward_pallas.1} parent=1 // pred_fallthru
      _
    // Predicated region
    $region42: #{gdnn_forward_pallas.1} parent=1 // pred_check
      _
    $region43: #{gdnn_forward_pallas.1} parent=1 // pred_check_branch
      %89 = sbr.rel (0) target = $region45
    $region44: #{gdnn_forward_pallas.1} parent=1 // pred_region
      %90 = dma.done [#allocation6], 2048
    $region45: #{gdnn_forward_pallas.1} parent=1 // pred_fallthru
      _
    // Predicated region
    $region46: #{gdnn_forward_pallas.1} parent=1 // pred_check
      _
    $region47: #{gdnn_forward_pallas.1} parent=1 // pred_check_branch
      %92 = sbr.rel (0) target = $region49
    $region48: #{gdnn_forward_pallas.1} parent=1 // pred_region
      %93 = dma.done [#allocation6], 1024
    $region49: #{gdnn_forward_pallas.1} parent=1 // pred_fallthru
      _
    // Predicated region
    $region50: #{gdnn_forward_pallas.1} parent=1 // pred_check
      _
    $region51: #{gdnn_forward_pallas.1} parent=1 // pred_check_branch
      %95 = sbr.rel (0) target = $region53
    $region52: #{gdnn_forward_pallas.1} parent=1 // pred_region
      %96 = dma.done [#allocation9], 1024
    $region53: #{gdnn_forward_pallas.1} parent=1 // pred_fallthru
      _
    // Predicated region
    $region54: #{gdnn_forward_pallas.1} parent=1 // pred_check
      _
    $region55: #{gdnn_forward_pallas.1} parent=1 // pred_check_branch
      %98 = sbr.rel (0) target = $region57
    $region56: #{gdnn_forward_pallas.1} parent=1 // pred_region
      %99 = dma.done [#allocation9], 1024
    $region57: #{gdnn_forward_pallas.1} parent=1 // pred_fallthru
      _
    %v101 = vld [vmem:[%s0] sm:$0xf]
    %v102 = vld [vmem:[%s0 + $0x4] sm:$0xf]
    %v103 = vld [vmem:[#allocation7] sm:$0xf]
    %v104 = vld [vmem:[#allocation7 + $0x4] sm:$0xf]
    %v105 = vld [vmem:[#allocation7 + $0x8] sm:$0xf]
    %v106 = vld [vmem:[#allocation7 + $0xc] sm:$0xf]
    %v107 = vld [vmem:[#allocation7 + $0x10] sm:$0xf]
    %v108 = vld [vmem:[#allocation7 + $0x14] sm:$0xf]
    %v109 = vld [vmem:[#allocation7 + $0x18] sm:$0xf]
    %v110 = vld [vmem:[#allocation7 + $0x1c] sm:$0xf]
    %v111 = vld [vmem:[#allocation7 + $0x20] sm:$0xf]
    %v112 = vld [vmem:[#allocation7 + $0x24] sm:$0xf]
    %v113 = vld [vmem:[#allocation7 + $0x28] sm:$0xf]
    %v114 = vld [vmem:[#allocation7 + $0x2c] sm:$0xf]
    %v115 = vld [vmem:[#allocation7 + $0x30] sm:$0xf]
    %v116 = vld [vmem:[#allocation7 + $0x34] sm:$0xf]
    %v117 = vld [vmem:[#allocation7 + $0x38] sm:$0xf]
    %v118 = vld [vmem:[#allocation7 + $0x3c] sm:$0xf]
    %v121 = vunpack.c.l.b16 %v101
    %v122 = vunpack.c.l.b16 %v102
    %v123 = vpack.c.b16 %v122, %v121
    %v141 = vunpack.c.l.b16 %v103
    %v142 = vunpack.c.l.b16 %v104
    %v143 = vunpack.c.l.b16 %v105
    %v144 = vunpack.c.l.b16 %v106
    %v145 = vunpack.c.l.b16 %v107
    %v146 = vunpack.c.l.b16 %v108
    %v147 = vunpack.c.l.b16 %v109
    %v148 = vunpack.c.l.b16 %v110
    %v149 = vunpack.c.l.b16 %v111
    %v150 = vunpack.c.l.b16 %v112
    %v151 = vunpack.c.l.b16 %v113
    %v152 = vunpack.c.l.b16 %v114
    %v153 = vunpack.c.l.b16 %v115
    %v154 = vunpack.c.l.b16 %v116
    %v155 = vunpack.c.l.b16 %v117
    %v156 = vunpack.c.l.b16 %v118
    %v157 = vpack.c.b16 %v142, %v141
    %v158 = vpack.c.b16 %v144, %v143
    %v159 = vpack.c.b16 %v146, %v145
    %v160 = vpack.c.b16 %v148, %v147
    %v161 = vpack.c.b16 %v150, %v149
    %v162 = vpack.c.b16 %v152, %v151
    %v163 = vpack.c.b16 %v154, %v153
    %v164 = vpack.c.b16 %v156, %v155
    %173 = vmatprep.subr.bf16.mxu0 0
    %174 = vmatpush1.bf16.msra.mxu0 %v164
    %175 = vmatprep.subr.bf16.mxu0 0
    %176 = vmatpush1.bf16.msra.mxu0 %v163
    %177 = vmatprep.subr.bf16.mxu0 0
    %178 = vmatpush1.bf16.msra.mxu0 %v162
    %179 = vmatprep.subr.bf16.mxu0 0
    %180 = vmatpush1.bf16.msra.mxu0 %v161
    %181 = vmatprep.subr.bf16.mxu0 0
    %182 = vmatpush1.bf16.msra.mxu0 %v160
    %183 = vmatprep.subr.bf16.mxu0 0
    %184 = vmatpush1.bf16.msra.mxu0 %v159
    %185 = vmatprep.subr.bf16.mxu0 0
    %186 = vmatpush1.bf16.msra.mxu0 %v158
    %187 = vmatprep.subr.bf16.mxu0 0
    %188 = vmatpush1.bf16.msra.mxu0 %v157
    %189 = vmatprep.subr.bf16.mxu0 0
    %190 = vmatpush2.bf16.msra.mxu0 0
    %191 = vmatprep.subr.bf16.mxu0 0
    %192 = vmatpush2.bf16.msra.mxu0 0
    %193 = vmatprep.subr.bf16.mxu0 0
    %194 = vmatpush2.bf16.msra.mxu0 0
    %195 = vmatprep.subr.bf16.mxu0 0
    %196 = vmatpush2.bf16.msra.mxu0 0
    %197 = vmatprep.subr.bf16.mxu0 0
    %198 = vmatpush2.bf16.msra.mxu0 0
    %199 = vmatprep.subr.bf16.mxu0 0
    %200 = vmatpush2.bf16.msra.mxu0 0
    %201 = vmatprep.subr.bf16.mxu0 0
    %202 = vmatpush2.bf16.msra.mxu0 0
    %203 = vmatprep.subr.bf16.mxu0 0
    %204 = vmatpush2.bf16.msra.mxu0 0
    %205 = vmatprep.mubr.bf16.mxu0 0
    %206 = vmatmul.mubr.bf16.gmra.mxu0 %v123
    %v207 = vpop.f32.mrf.mxu0
    %v208 = vadd.f32 0.0, %v207
    %v209 = vpop.f32.mrf.mxu0
    %v210 = vpop.f32.mrf.mxu0
    %v211 = vadd.f32 0.0, %v210
    %v212 = vpop.f32.mrf.mxu0
    %213 = vdwg.mxu0
    %v214 = vld [vmem:[%s6] sm:$0x1]
    %v216 = vlaneseq
    %v217 = vshrl.u32 %v216, 7
    %v218 = vsub.s32 0, %v217
    %v219 = vrot.slane %v214, %v218
    %v221 = vadd.f32 %v208, %v219
    %v222 = vadd.f32 %v211, %v219
    %v223 = vmax.f32 %v221, 0.0
    %v224 = vmax.f32 %v222, 0.0
    %v225 = vmul.f32 %v208, 0.5
    %v226 = vmul.f32 %v211, 0.5
    %v227 = vsub.f32 %v223, %v225
    %v228 = vsub.f32 %v224, %v226
    %v229 = vpack.c.bf16 %v228, %v227
    %v231 = vunpack.c.l.b16 %v229
    %v232 = vunpack.c.h.b16 %v229
    %v233 = vpack.c.b16 %v231, %v231
    %v234 = vpack.c.b16 %v232, %v232
    %237 = vst [vmem:[#allocation2 + $0x4] sm:$0xf] %v233
    %238 = vst [vmem:[#allocation2 + $0xc] sm:$0xf] %v234
    %v239 = vld [vmem:[#allocation8] sm:$0xf]
    %v240 = vld [vmem:[#allocation8 + $0x4] sm:$0xf]
    %v241 = vld [vmem:[#allocation8 + $0x8] sm:$0xf]
    %v242 = vld [vmem:[#allocation8 + $0xc] sm:$0xf]
    %v243 = vld [vmem:[#allocation8 + $0x10] sm:$0xf]
    %v244 = vld [vmem:[#allocation8 + $0x14] sm:$0xf]
    %v245 = vld [vmem:[#allocation8 + $0x18] sm:$0xf]
    %v246 = vld [vmem:[#allocation8 + $0x1c] sm:$0xf]
    %v247 = vld [vmem:[#allocation8 + $0x20] sm:$0xf]
    %v248 = vld [vmem:[#allocation8 + $0x24] sm:$0xf]
    %v249 = vld [vmem:[#allocation8 + $0x28] sm:$0xf]
    %v250 = vld [vmem:[#allocation8 + $0x2c] sm:$0xf]
    %v251 = vld [vmem:[#allocation8 + $0x30] sm:$0xf]
    %v252 = vld [vmem:[#allocation8 + $0x34] sm:$0xf]
    %v253 = vld [vmem:[#allocation8 + $0x38] sm:$0xf]
    %v254 = vld [vmem:[#allocation8 + $0x3c] sm:$0xf]
    %v255 = vld [vmem:[#allocation2 + $0x4] sm:$0xf]
    %v256 = vld [vmem:[#allocation2 + $0xc] sm:$0xf]
    %v257 = vld [vmem:[#allocation3] sm:$0xf]
    %v258 = vld [vmem:[#allocation3 + $0x4] sm:$0xf]
    %v259 = vld [vmem:[#allocation3 + $0x8] sm:$0xf]
    %v260 = vld [vmem:[#allocation3 + $0xc] sm:$0xf]
    %v261 = vld [vmem:[#allocation3 + $0x10] sm:$0xf]
    %v262 = vld [vmem:[#allocation3 + $0x14] sm:$0xf]
    %v263 = vld [vmem:[#allocation3 + $0x18] sm:$0xf]
    %v264 = vld [vmem:[#allocation3 + $0x1c] sm:$0xf]
    %v265 = vld [vmem:[#allocation3 + $0x20] sm:$0xf]
    %v266 = vld [vmem:[#allocation3 + $0x24] sm:$0xf]
    %v267 = vld [vmem:[#allocation3 + $0x28] sm:$0xf]
    %v268 = vld [vmem:[#allocation3 + $0x2c] sm:$0xf]
    %v269 = vld [vmem:[#allocation3 + $0x30] sm:$0xf]
    %v270 = vld [vmem:[#allocation3 + $0x34] sm:$0xf]
    %v271 = vld [vmem:[#allocation3 + $0x38] sm:$0xf]
    %v272 = vld [vmem:[#allocation3 + $0x3c] sm:$0xf]
    %v275 = vunpack.c.l.b16 %v255
    %v276 = vunpack.c.l.b16 %v256
    %v277 = vpack.c.b16 %v276, %v275
    %v295 = vunpack.c.l.b16 %v257
    %v296 = vunpack.c.l.b16 %v258
    %v297 = vunpack.c.l.b16 %v259
    %v298 = vunpack.c.l.b16 %v260
    %v299 = vunpack.c.l.b16 %v261
    %v300 = vunpack.c.l.b16 %v262
    %v301 = vunpack.c.l.b16 %v263
    %v302 = vunpack.c.l.b16 %v264
    %v303 = vunpack.c.l.b16 %v265
    %v304 = vunpack.c.l.b16 %v266
    %v305 = vunpack.c.l.b16 %v267
    %v306 = vunpack.c.l.b16 %v268
    %v307 = vunpack.c.l.b16 %v269
    %v308 = vunpack.c.l.b16 %v270
    %v309 = vunpack.c.l.b16 %v271
    %v310 = vunpack.c.l.b16 %v272
    %v311 = vpack.c.b16 %v296, %v295
    %v312 = vpack.c.b16 %v298, %v297
    %v313 = vpack.c.b16 %v300, %v299
    %v314 = vpack.c.b16 %v302, %v301
    %v315 = vpack.c.b16 %v304, %v303
    %v316 = vpack.c.b16 %v306, %v305
    %v317 = vpack.c.b16 %v308, %v307
    %v318 = vpack.c.b16 %v310, %v309
    %327 = vmatprep.subr.bf16.mxu0 0
    %328 = vmatpush1.bf16.msra.mxu0 %v318
    %329 = vmatprep.subr.bf16.mxu0 0
    %330 = vmatpush1.bf16.msra.mxu0 %v317
    %331 = vmatprep.subr.bf16.mxu0 0
    %332 = vmatpush1.bf16.msra.mxu0 %v316
    %333 = vmatprep.subr.bf16.mxu0 0
    %334 = vmatpush1.bf16.msra.mxu0 %v315
    %335 = vmatprep.subr.bf16.mxu0 0
    %336 = vmatpush1.bf16.msra.mxu0 %v314
    %337 = vmatprep.subr.bf16.mxu0 0
    %338 = vmatpush1.bf16.msra.mxu0 %v313
    %339 = vmatprep.subr.bf16.mxu0 0
    %340 = vmatpush1.bf16.msra.mxu0 %v312
    %341 = vmatprep.subr.bf16.mxu0 0
    %342 = vmatpush1.bf16.msra.mxu0 %v311
    %343 = vmatprep.subr.bf16.mxu0 0
    %344 = vmatpush2.bf16.msra.mxu0 0
    %345 = vmatprep.subr.bf16.mxu0 0
    %346 = vmatpush2.bf16.msra.mxu0 0
    %347 = vmatprep.subr.bf16.mxu0 0
    %348 = vmatpush2.bf16.msra.mxu0 0
    %349 = vmatprep.subr.bf16.mxu0 0
    %350 = vmatpush2.bf16.msra.mxu0 0
    %351 = vmatprep.subr.bf16.mxu0 0
    %352 = vmatpush2.bf16.msra.mxu0 0
    %353 = vmatprep.subr.bf16.mxu0 0
    %354 = vmatpush2.bf16.msra.mxu0 0
    %355 = vmatprep.subr.bf16.mxu0 0
    %356 = vmatpush2.bf16.msra.mxu0 0
    %357 = vmatprep.subr.bf16.mxu0 0
    %358 = vmatpush2.bf16.msra.mxu0 0
    %359 = vmatprep.mubr.bf16.mxu0 0
    %360 = vmatmul.mubr.bf16.gmra.mxu0 %v277
    %v361 = vpop.f32.mrf.mxu0
    %v362 = vadd.f32 0.0, %v361
    %v363 = vpop.f32.mrf.mxu0
    %v364 = vpop.f32.mrf.mxu0
    %v365 = vadd.f32 0.0, %v364
    %v366 = vpop.f32.mrf.mxu0
    %367 = vdwg.mxu0
    %v384 = vunpack.c.l.b16 %v239
    %v385 = vunpack.c.l.b16 %v240
    %v386 = vunpack.c.l.b16 %v241
    %v387 = vunpack.c.l.b16 %v242
    %v388 = vunpack.c.l.b16 %v243
    %v389 = vunpack.c.l.b16 %v244
    %v390 = vunpack.c.l.b16 %v245
    %v391 = vunpack.c.l.b16 %v246
    %v392 = vunpack.c.l.b16 %v247
    %v393 = vunpack.c.l.b16 %v248
    %v394 = vunpack.c.l.b16 %v249
    %v395 = vunpack.c.l.b16 %v250
    %v396 = vunpack.c.l.b16 %v251
    %v397 = vunpack.c.l.b16 %v252
    %v398 = vunpack.c.l.b16 %v253
    %v399 = vunpack.c.l.b16 %v254
    %v400 = vpack.c.b16 %v385, %v384
    %v401 = vpack.c.b16 %v387, %v386
    %v402 = vpack.c.b16 %v389, %v388
    %v403 = vpack.c.b16 %v391, %v390
    %v404 = vpack.c.b16 %v393, %v392
    %v405 = vpack.c.b16 %v395, %v394
    %v406 = vpack.c.b16 %v397, %v396
    %v407 = vpack.c.b16 %v399, %v398
    %416 = vmatprep.subr.bf16.mxu0 0
    %417 = vmatpush1.bf16.msra.mxu0 %v407
    %418 = vmatprep.subr.bf16.mxu0 0
    %419 = vmatpush1.bf16.msra.mxu0 %v406
    %420 = vmatprep.subr.bf16.mxu0 0
    %421 = vmatpush1.bf16.msra.mxu0 %v405
    %422 = vmatprep.subr.bf16.mxu0 0
    %423 = vmatpush1.bf16.msra.mxu0 %v404
    %424 = vmatprep.subr.bf16.mxu0 0
    %425 = vmatpush1.bf16.msra.mxu0 %v403
    %426 = vmatprep.subr.bf16.mxu0 0
    %427 = vmatpush1.bf16.msra.mxu0 %v402
    %428 = vmatprep.subr.bf16.mxu0 0
    %429 = vmatpush1.bf16.msra.mxu0 %v401
    %430 = vmatprep.subr.bf16.mxu0 0
    %431 = vmatpush1.bf16.msra.mxu0 %v400
    %432 = vmatprep.subr.bf16.mxu0 0
    %433 = vmatpush2.bf16.msra.mxu0 0
    %434 = vmatprep.subr.bf16.mxu0 0
    %435 = vmatpush2.bf16.msra.mxu0 0
    %436 = vmatprep.subr.bf16.mxu0 0
    %437 = vmatpush2.bf16.msra.mxu0 0
    %438 = vmatprep.subr.bf16.mxu0 0
    %439 = vmatpush2.bf16.msra.mxu0 0
    %440 = vmatprep.subr.bf16.mxu0 0
    %441 = vmatpush2.bf16.msra.mxu0 0
    %442 = vmatprep.subr.bf16.mxu0 0
    %443 = vmatpush2.bf16.msra.mxu0 0
    %444 = vmatprep.subr.bf16.mxu0 0
    %445 = vmatpush2.bf16.msra.mxu0 0
    %446 = vmatprep.subr.bf16.mxu0 0
    %447 = vmatpush2.bf16.msra.mxu0 0
    %448 = vmatprep.mubr.bf16.mxu0 0
    %449 = vmatmul.mubr.bf16.gmra.mxu0 %v123
    %v450 = vpop.f32.mrf.mxu0
    %v451 = vadd.f32 %v362, %v450
    %v452 = vpop.f32.mrf.mxu0
    %v453 = vpop.f32.mrf.mxu0
    %v454 = vadd.f32 %v365, %v453
    %v455 = vpop.f32.mrf.mxu0
    %456 = vdwg.mxu0
    %v457 = vld [vmem:[%s7] sm:$0x1]
    %v459 = vlaneseq
    %v460 = vshrl.u32 %v459, 7
    %v461 = vsub.s32 0, %v460
    %v462 = vrot.slane %v457, %v461
    %v464 = vadd.f32 %v451, %v462
    %v465 = vadd.f32 %v454, %v462
    %v466 = vmax.f32 %v464, 0.0
    %v467 = vmax.f32 %v465, 0.0
    %v468 = vmul.f32 %v451, 0.5
    %v469 = vmul.f32 %v454, 0.5
    %v470 = vsub.f32 %v466, %v468
    %v471 = vsub.f32 %v467, %v469
    %v472 = vpack.c.bf16 %v471, %v470
    %v474 = vunpack.c.l.b16 %v472
    %v475 = vunpack.c.h.b16 %v472
    %v476 = vpack.c.b16 %v474, %v474
    %v477 = vpack.c.b16 %v475, %v475
    %480 = vst [vmem:[#allocation2] sm:$0xf] %v476
    %481 = vst [vmem:[#allocation2 + $0x8] sm:$0xf] %v477
    %v482 = vld [vmem:[#allocation10] sm:$0xf]
    %v483 = vld [vmem:[#allocation10 + $0x4] sm:$0xf]
    %v484 = vld [vmem:[#allocation10 + $0x8] sm:$0xf]
    %v485 = vld [vmem:[#allocation10 + $0xc] sm:$0xf]
    %v486 = vld [vmem:[#allocation10 + $0x10] sm:$0xf]
    %v487 = vld [vmem:[#allocation10 + $0x14] sm:$0xf]
    %v488 = vld [vmem:[#allocation10 + $0x18] sm:$0xf]
    %v489 = vld [vmem:[#allocation10 + $0x1c] sm:$0xf]
    %v490 = vld [vmem:[#allocation10 + $0x20] sm:$0xf]
    %v491 = vld [vmem:[#allocation10 + $0x24] sm:$0xf]
    %v492 = vld [vmem:[#allocation10 + $0x28] sm:$0xf]
    %v493 = vld [vmem:[#allocation10 + $0x2c] sm:$0xf]
    %v494 = vld [vmem:[#allocation10 + $0x30] sm:$0xf]
    %v495 = vld [vmem:[#allocation10 + $0x34] sm:$0xf]
    %v496 = vld [vmem:[#allocation10 + $0x38] sm:$0xf]
    %v497 = vld [vmem:[#allocation10 + $0x3c] sm:$0xf]
    %v498 = vld [vmem:[#allocation2] sm:$0xff]
    %v499 = vld [vmem:[#allocation2 + $0x8] sm:$0xff]
    %v500 = vld [vmem:[#allocation5] sm:$0xf]
    %v501 = vld [vmem:[#allocation5 + $0x4] sm:$0xf]
    %v502 = vld [vmem:[#allocation5 + $0x8] sm:$0xf]
    %v503 = vld [vmem:[#allocation5 + $0xc] sm:$0xf]
    %v504 = vld [vmem:[#allocation5 + $0x10] sm:$0xf]
    %v505 = vld [vmem:[#allocation5 + $0x14] sm:$0xf]
    %v506 = vld [vmem:[#allocation5 + $0x18] sm:$0xf]
    %v507 = vld [vmem:[#allocation5 + $0x1c] sm:$0xf]
    %v508 = vld [vmem:[#allocation5 + $0x20] sm:$0xf]
    %v509 = vld [vmem:[#allocation5 + $0x24] sm:$0xf]
    %v510 = vld [vmem:[#allocation5 + $0x28] sm:$0xf]
    %v511 = vld [vmem:[#allocation5 + $0x2c] sm:$0xf]
    %v512 = vld [vmem:[#allocation5 + $0x30] sm:$0xf]
    %v513 = vld [vmem:[#allocation5 + $0x34] sm:$0xf]
    %v514 = vld [vmem:[#allocation5 + $0x38] sm:$0xf]
    %v515 = vld [vmem:[#allocation5 + $0x3c] sm:$0xf]
    %v516 = vld [vmem:[#allocation5 + $0x40] sm:$0xf]
    %v517 = vld [vmem:[#allocation5 + $0x44] sm:$0xf]
    %v518 = vld [vmem:[#allocation5 + $0x48] sm:$0xf]
    %v519 = vld [vmem:[#allocation5 + $0x4c] sm:$0xf]
    %v520 = vld [vmem:[#allocation5 + $0x50] sm:$0xf]
    %v521 = vld [vmem:[#allocation5 + $0x54] sm:$0xf]
    %v522 = vld [vmem:[#allocation5 + $0x58] sm:$0xf]
    %v523 = vld [vmem:[#allocation5 + $0x5c] sm:$0xf]
    %v524 = vld [vmem:[#allocation5 + $0x60] sm:$0xf]
    %v525 = vld [vmem:[#allocation5 + $0x64] sm:$0xf]
    %v526 = vld [vmem:[#allocation5 + $0x68] sm:$0xf]
    %v527 = vld [vmem:[#allocation5 + $0x6c] sm:$0xf]
    %v528 = vld [vmem:[#allocation5 + $0x70] sm:$0xf]
    %v529 = vld [vmem:[#allocation5 + $0x74] sm:$0xf]
    %v530 = vld [vmem:[#allocation5 + $0x78] sm:$0xf]
    %v531 = vld [vmem:[#allocation5 + $0x7c] sm:$0xf]
    %v534 = vunpack.c.l.b16 %v498
    %v535 = vunpack.c.h.b16 %v498
    %v536 = vunpack.c.l.b16 %v499
    %v537 = vunpack.c.h.b16 %v499
    %v538 = vpack.c.b16 %v536, %v534
    %v539 = vpack.c.b16 %v537, %v535
    %v574 = vunpack.c.l.b16 %v500
    %v575 = vunpack.c.l.b16 %v501
    %v576 = vunpack.c.l.b16 %v502
    %v577 = vunpack.c.l.b16 %v503
    %v578 = vunpack.c.l.b16 %v504
    %v579 = vunpack.c.l.b16 %v505
    %v580 = vunpack.c.l.b16 %v506
    %v581 = vunpack.c.l.b16 %v507
    %v582 = vunpack.c.l.b16 %v508
    %v583 = vunpack.c.l.b16 %v509
    %v584 = vunpack.c.l.b16 %v510
    %v585 = vunpack.c.l.b16 %v511
    %v586 = vunpack.c.l.b16 %v512
    %v587 = vunpack.c.l.b16 %v513
    %v588 = vunpack.c.l.b16 %v514
    %v589 = vunpack.c.l.b16 %v515
    %v590 = vunpack.c.l.b16 %v516
    %v591 = vunpack.c.l.b16 %v517
    %v592 = vunpack.c.l.b16 %v518
    %v593 = vunpack.c.l.b16 %v519
    %v594 = vunpack.c.l.b16 %v520
    %v595 = vunpack.c.l.b16 %v521
    %v596 = vunpack.c.l.b16 %v522
    %v597 = vunpack.c.l.b16 %v523
    %v598 = vunpack.c.l.b16 %v524
    %v599 = vunpack.c.l.b16 %v525
    %v600 = vunpack.c.l.b16 %v526
    %v601 = vunpack.c.l.b16 %v527
    %v602 = vunpack.c.l.b16 %v528
    %v603 = vunpack.c.l.b16 %v529
    %v604 = vunpack.c.l.b16 %v530
    %v605 = vunpack.c.l.b16 %v531
    %v606 = vpack.c.b16 %v575, %v574
    %v607 = vpack.c.b16 %v577, %v576
    %v608 = vpack.c.b16 %v579, %v578
    %v609 = vpack.c.b16 %v581, %v580
    %v610 = vpack.c.b16 %v583, %v582
    %v611 = vpack.c.b16 %v585, %v584
    %v612 = vpack.c.b16 %v587, %v586
    %v613 = vpack.c.b16 %v589, %v588
    %v614 = vpack.c.b16 %v591, %v590
    %v615 = vpack.c.b16 %v593, %v592
    %v616 = vpack.c.b16 %v595, %v594
    %v617 = vpack.c.b16 %v597, %v596
    %v618 = vpack.c.b16 %v599, %v598
    %v619 = vpack.c.b16 %v601, %v600
    %v620 = vpack.c.b16 %v603, %v602
    %v621 = vpack.c.b16 %v605, %v604
    %638 = vmatprep.subr.bf16.mxu0 0
    %639 = vmatpush1.bf16.msra.mxu0 %v613
    %640 = vmatprep.subr.bf16.mxu0 0
    %641 = vmatpush1.bf16.msra.mxu0 %v612
    %642 = vmatprep.subr.bf16.mxu0 0
    %643 = vmatpush1.bf16.msra.mxu0 %v611
    %644 = vmatprep.subr.bf16.mxu0 0
    %645 = vmatpush1.bf16.msra.mxu0 %v610
    %646 = vmatprep.subr.bf16.mxu0 0
    %647 = vmatpush1.bf16.msra.mxu0 %v609
    %648 = vmatprep.subr.bf16.mxu0 0
    %649 = vmatpush1.bf16.msra.mxu0 %v608
    %650 = vmatprep.subr.bf16.mxu0 0
    %651 = vmatpush1.bf16.msra.mxu0 %v607
    %652 = vmatprep.subr.bf16.mxu0 0
    %653 = vmatpush1.bf16.msra.mxu0 %v606
    %654 = vmatprep.subr.bf16.mxu0 0
    %655 = vmatpush2.bf16.msra.mxu0 %v621
    %656 = vmatprep.subr.bf16.mxu0 0
    %657 = vmatpush2.bf16.msra.mxu0 %v620
    %658 = vmatprep.subr.bf16.mxu0 0
    %659 = vmatpush2.bf16.msra.mxu0 %v619
    %660 = vmatprep.subr.bf16.mxu0 0
    %661 = vmatpush2.bf16.msra.mxu0 %v618
    %662 = vmatprep.subr.bf16.mxu0 0
    %663 = vmatpush2.bf16.msra.mxu0 %v617
    %664 = vmatprep.subr.bf16.mxu0 0
    %665 = vmatpush2.bf16.msra.mxu0 %v616
    %666 = vmatprep.subr.bf16.mxu0 0
    %667 = vmatpush2.bf16.msra.mxu0 %v615
    %668 = vmatprep.subr.bf16.mxu0 0
    %669 = vmatpush2.bf16.msra.mxu0 %v614
    %670 = vmatprep.mubr.bf16.mxu0 %v539
    %671 = vmatmul.mubr.bf16.gmra.mxu0 %v538
    %v672 = vpop.f32.mrf.mxu0
    %v673 = vadd.f32 0.0, %v672
    %v674 = vpop.f32.mrf.mxu0
    %v675 = vpop.f32.mrf.mxu0
    %v676 = vadd.f32 0.0, %v675
    %v677 = vpop.f32.mrf.mxu0
    %678 = vdwg.mxu0
    %v695 = vunpack.c.l.b16 %v482
    %v696 = vunpack.c.l.b16 %v483
    %v697 = vunpack.c.l.b16 %v484
    %v698 = vunpack.c.l.b16 %v485
    %v699 = vunpack.c.l.b16 %v486
    %v700 = vunpack.c.l.b16 %v487
    %v701 = vunpack.c.l.b16 %v488
    %v702 = vunpack.c.l.b16 %v489
    %v703 = vunpack.c.l.b16 %v490
    %v704 = vunpack.c.l.b16 %v491
    %v705 = vunpack.c.l.b16 %v492
    %v706 = vunpack.c.l.b16 %v493
    %v707 = vunpack.c.l.b16 %v494
    %v708 = vunpack.c.l.b16 %v495
    %v709 = vunpack.c.l.b16 %v496
    %v710 = vunpack.c.l.b16 %v497
    %v711 = vpack.c.b16 %v696, %v695
    %v712 = vpack.c.b16 %v698, %v697
    %v713 = vpack.c.b16 %v700, %v699
    %v714 = vpack.c.b16 %v702, %v701
    %v715 = vpack.c.b16 %v704, %v703
    %v716 = vpack.c.b16 %v706, %v705
    %v717 = vpack.c.b16 %v708, %v707
    %v718 = vpack.c.b16 %v710, %v709
    %727 = vmatprep.subr.bf16.mxu0 0
    %728 = vmatpush1.bf16.msra.mxu0 %v718
    %729 = vmatprep.subr.bf16.mxu0 0
    %730 = vmatpush1.bf16.msra.mxu0 %v717
    %731 = vmatprep.subr.bf16.mxu0 0
    %732 = vmatpush1.bf16.msra.mxu0 %v716
    %733 = vmatprep.subr.bf16.mxu0 0
    %734 = vmatpush1.bf16.msra.mxu0 %v715
    %735 = vmatprep.subr.bf16.mxu0 0
    %736 = vmatpush1.bf16.msra.mxu0 %v714
    %737 = vmatprep.subr.bf16.mxu0 0
    %738 = vmatpush1.bf16.msra.mxu0 %v713
    %739 = vmatprep.subr.bf16.mxu0 0
    %740 = vmatpush1.bf16.msra.mxu0 %v712
    %741 = vmatprep.subr.bf16.mxu0 0
    %742 = vmatpush1.bf16.msra.mxu0 %v711
    %743 = vmatprep.subr.bf16.mxu0 0
    %744 = vmatpush2.bf16.msra.mxu0 0
    %745 = vmatprep.subr.bf16.mxu0 0
    %746 = vmatpush2.bf16.msra.mxu0 0
    %747 = vmatprep.subr.bf16.mxu0 0
    %748 = vmatpush2.bf16.msra.mxu0 0
    %749 = vmatprep.subr.bf16.mxu0 0
    %750 = vmatpush2.bf16.msra.mxu0 0
    %751 = vmatprep.subr.bf16.mxu0 0
    %752 = vmatpush2.bf16.msra.mxu0 0
    %753 = vmatprep.subr.bf16.mxu0 0
    %754 = vmatpush2.bf16.msra.mxu0 0
    %755 = vmatprep.subr.bf16.mxu0 0
    %756 = vmatpush2.bf16.msra.mxu0 0
    %757 = vmatprep.subr.bf16.mxu0 0
    %758 = vmatpush2.bf16.msra.mxu0 0
    %759 = vmatprep.mubr.bf16.mxu0 0
    %760 = vmatmul.mubr.bf16.gmra.mxu0 %v123
    %v761 = vpop.f32.mrf.mxu0
    %v762 = vadd.f32 %v673, %v761
    %v763 = vpop.f32.mrf.mxu0
    %v764 = vpop.f32.mrf.mxu0
    %v765 = vadd.f32 %v676, %v764
    %v766 = vpop.f32.mrf.mxu0
    %767 = vdwg.mxu0
    %v768 = vld [vmem:[%s8] sm:$0x1]
    %v770 = vlaneseq
    %v771 = vshrl.u32 %v770, 7
    %v772 = vsub.s32 0, %v771
    %v773 = vrot.slane %v768, %v772
    %v775 = vadd.f32 %v762, %v773
    %v776 = vadd.f32 %v765, %v773
    %777 = vst [vmem:[%s9] sm:$0xff] %v775
    %778 = vst [vmem:[%s9 + $0x8] sm:$0xff] %v776
    // Predicated region
    $region58: #{gdnn_forward_pallas.1} parent=1 // pred_check
      _
    $region59: #{gdnn_forward_pallas.1} parent=1 // pred_check_branch
      %780 = sbr.rel (0) target = $region61
    $region60: #{gdnn_forward_pallas.1} parent=1 // pred_region
      _
    $region61: #{gdnn_forward_pallas.1} parent=1 // pred_fallthru
      _
    // Predicated region
    $region62: #{gdnn_forward_pallas.1} parent=1 // pred_check
      _
    $region63: #{gdnn_forward_pallas.1} parent=1 // pred_check_branch
      %782 = sbr.rel (0) target = $region65
    $region64: #{gdnn_forward_pallas.1} parent=1 // pred_region
      _
    $region65: #{gdnn_forward_pallas.1} parent=1 // pred_fallthru
      _
    %783 = vsyncpa [#allocation4], 1
    %784 = vsyncpa [#allocation6], 1
    %785 = vsyncpa [#allocation9], 1

// kernel: gdnn_forward_pallas.1
$region0: #{gdnn_forward_pallas.1}
  #allocation0 [shape = 'u32[]', space=smem, size = 0x4, offset = 0x4, fixed_abs, tag = 'smem constant byte address 0x4 - core index']
  #allocation1 [shape = 'u32[144,128]{1,0:T(1,128)}', space=vmem, size = 0x12000, scoped, tag = 'internal scratch']
  #allocation2 [shape = 'bf16[16,256]{1,0:T(8,128)(2,1)}', space=vmem, size = 0x2000, scoped, tag = 'scratch operand']
  %s0 = inlined_call_operand.vmem [shape: bf16[16,128], index: 0, kind: input, shape index: {}]
  %s1 = inlined_call_operand.hbm [shape: bf16[128,128], index: 1, kind: input, shape index: {}]
  %s2 = inlined_call_operand.hbm [shape: bf16[256,128], index: 2, kind: input, shape index: {}]
  %s3 = inlined_call_operand.hbm [shape: bf16[128,128], index: 3, kind: input, shape index: {}]
  %s4 = inlined_call_operand.hbm [shape: bf16[128,128], index: 4, kind: input, shape index: {}]
  %s5 = inlined_call_operand.hbm [shape: bf16[128,128], index: 5, kind: input, shape index: {}]
  %s6 = inlined_call_operand.vmem [shape: f32[1,128], index: 6, kind: input, shape index: {}]
  %s7 = inlined_call_operand.vmem [shape: f32[1,128], index: 7, kind: input, shape index: {}]
  %s8 = inlined_call_operand.vmem [shape: f32[1,128], index: 8, kind: input, shape index: {}]
  %s9 = inlined_call_operand.vmem [shape: f32[16,128], index: 9, kind: output, shape index: {}]
  %s10 = sld [smem:[#allocation0]]
  $region66: #{gdnn_forward_pallas.1} parent=0
    _
  %s12 = ssub.s32 1, %s10
  %s13 = scalar_select 0, %s12, %s10
  $region1: #{gdnn_forward_pallas.1} parent=0
    #allocation3 [shape = 'u8[32768]{0}', space=vmem, size = 0x8000, scoped, tag = 'input window, operand 1, single buffered']
    #allocation4 [shape = 's32[1]{0}', space=sflag, size = 0x4, scoped, tag = 'scoped memory for gdnn_forward_pallas.1']
    #allocation5 [shape = 'u8[65536]{0}', space=vmem, size = 0x10000, scoped, tag = 'input window, operand 2, single buffered']
    #allocation6 [shape = 's32[1]{0}', space=sflag, size = 0x4, scoped, tag = 'scoped memory for gdnn_forward_pallas.1']
    #allocation7 [shape = 'u8[32768]{0}', space=vmem, size = 0x8000, scoped, tag = 'input window, operand 3, single buffered']
    #allocation8 [shape = 'u8[32768]{0}', space=vmem, size = 0x8000, scoped, tag = 'input window, operand 4, single buffered']
    #allocation9 [shape = 's32[1]{0}', space=sflag, size = 0x4, scoped, tag = 'scoped memory for gdnn_forward_pallas.1']
    #allocation10 [shape = 'u8[32768]{0}', space=vmem, size = 0x8000, scoped, tag = 'input window, operand 5, single buffered']
    %14 = vsyncpa [#allocation4], 0
    %15 = vsyncpa [#allocation6], 0
    %16 = vsyncpa [#allocation9], 0
    // Predicated region
    $region2: #{gdnn_forward_pallas.1} parent=1 // pred_check
      _
    $region3: #{gdnn_forward_pallas.1} parent=1 // pred_check_branch
      %18 = sbr.rel (0) target = $region5
    $region4: #{gdnn_forward_pallas.1} parent=1 // pred_region
      _
    $region5: #{gdnn_forward_pallas.1} parent=1 // pred_fallthru
      _
    // Predicated region
    $region6: #{gdnn_forward_pallas.1} parent=1 // pred_check
      _
    $region7: #{gdnn_forward_pallas.1} parent=1 // pred_check_branch
      %20 = sbr.rel (0) target = $region9
    $region8: #{gdnn_forward_pallas.1} parent=1 // pred_region
      %s22 = ssub.s32 1024, 1024
      %23 = vsyncadd [#allocation4], %s22
      %s24 = sshll.u32 [#allocation3], 4
      %s25 = int_to_ptr.vmem [resolvable:$true] %s24
      %30 = dma.hbm_to_vmem [thread:$0]  %s1, 1024, %s25, [#allocation4], 64, 64, 4
    $region9: #{gdnn_forward_pallas.1} parent=1 // pred_fallthru
      _
    // Predicated region
    $region10: #{gdnn_forward_pallas.1} parent=1 // pred_check
      _
    $region11: #{gdnn_forward_pallas.1} parent=1 // pred_check_branch
      %32 = sbr.rel (0) target = $region13
    $region12: #{gdnn_forward_pallas.1} parent=1 // pred_region
      %s34 = ssub.s32 2048, 2048
      %35 = vsyncadd [#allocation6], %s34
      %s36 = sshll.u32 [#allocation5], 4
      %s37 = int_to_ptr.vmem [resolvable:$true] %s36
      %42 = dma.hbm_to_vmem [thread:$0]  %s2, 2048, %s37, [#allocation6], 64, 64, 4
    $region13: #{gdnn_forward_pallas.1} parent=1 // pred_fallthru
      _
    // Predicated region
    $region14: #{gdnn_forward_pallas.1} parent=1 // pred_check
      _
    $region15: #{gdnn_forward_pallas.1} parent=1 // pred_check_branch
      %44 = sbr.rel (0) target = $region17
    $region16: #{gdnn_forward_pallas.1} parent=1 // pred_region
      %s46 = ssub.s32 1024, 1024
      %47 = vsyncadd [#allocation6], %s46
      %s48 = sshll.u32 [#allocation7], 4
      %s49 = int_to_ptr.vmem [resolvable:$true] %s48
      %54 = dma.hbm_to_vmem [thread:$0]  %s3, 1024, %s49, [#allocation6], 64, 64, 4
    $region17: #{gdnn_forward_pallas.1} parent=1 // pred_fallthru
      _
    // Predicated region
    $region18: #{gdnn_forward_pallas.1} parent=1 // pred_check
      _
    $region19: #{gdnn_forward_pallas.1} parent=1 // pred_check_branch
      %56 = sbr.rel (0) target = $region21
    $region20: #{gdnn_forward_pallas.1} parent=1 // pred_region
      %s58 = ssub.s32 1024, 1024
      %59 = vsyncadd [#allocation9], %s58
      %s60 = sshll.u32 [#allocation8], 4
      %s61 = int_to_ptr.vmem [resolvable:$true] %s60
      %66 = dma.hbm_to_vmem [thread:$0]  %s4, 1024, %s61, [#allocation9], 64, 64, 4
    $region21: #{gdnn_forward_pallas.1} parent=1 // pred_fallthru
      _
    // Predicated region
    $region22: #{gdnn_forward_pallas.1} parent=1 // pred_check
      _
    $region23: #{gdnn_forward_pallas.1} parent=1 // pred_check_branch
      %68 = sbr.rel (0) target = $region25
    $region24: #{gdnn_forward_pallas.1} parent=1 // pred_region
      %s70 = ssub.s32 1024, 1024
      %71 = vsyncadd [#allocation9], %s70
      %s72 = sshll.u32 [#allocation10], 4
      %s73 = int_to_ptr.vmem [resolvable:$true] %s72
      %78 = dma.hbm_to_vmem [thread:$0]  %s5, 1024, %s73, [#allocation9], 64, 64, 4
    $region25: #{gdnn_forward_pallas.1} parent=1 // pred_fallthru
      _
    // Predicated region
    $region26: #{gdnn_forward_pallas.1} parent=1 // pred_check
      _
    $region27: #{gdnn_forward_pallas.1} parent=1 // pred_check_branch
      %80 = sbr.rel (0) target = $region29
    $region28: #{gdnn_forward_pallas.1} parent=1 // pred_region
      _
    $region29: #{gdnn_forward_pallas.1} parent=1 // pred_fallthru
      _
    // Predicated region
    $region30: #{gdnn_forward_pallas.1} parent=1 // pred_check
      _
    $region31: #{gdnn_forward_pallas.1} parent=1 // pred_check_branch
      %82 = sbr.rel (0) target = $region33
    $region32: #{gdnn_forward_pallas.1} parent=1 // pred_region
      _
    $region33: #{gdnn_forward_pallas.1} parent=1 // pred_fallthru
      _
    // Predicated region
    $region34: #{gdnn_forward_pallas.1} parent=1 // pred_check
      _
    $region35: #{gdnn_forward_pallas.1} parent=1 // pred_check_branch
      %84 = sbr.rel (0) target = $region37
    $region36: #{gdnn_forward_pallas.1} parent=1 // pred_region
      _
    $region37: #{gdnn_forward_pallas.1} parent=1 // pred_fallthru
      _
    // Predicated region
    $region38: #{gdnn_forward_pallas.1} parent=1 // pred_check
      _
    $region39: #{gdnn_forward_pallas.1} parent=1 // pred_check_branch
      %86 = sbr.rel (0) target = $region41
    $region40: #{gdnn_forward_pallas.1} parent=1 // pred_region
      %87 = dma.done [#allocation4], 1024
    $region41: #{gdnn_forward_pallas.1} parent=1 // pred_fallthru
      _
    // Predicated region
    $region42: #{gdnn_forward_pallas.1} parent=1 // pred_check
      _
    $region43: #{gdnn_forward_pallas.1} parent=1 // pred_check_branch
      %89 = sbr.rel (0) target = $region45
    $region44: #{gdnn_forward_pallas.1} parent=1 // pred_region
      %90 = dma.done [#allocation6], 2048
    $region45: #{gdnn_forward_pallas.1} parent=1 // pred_fallthru
      _
    // Predicated region
    $region46: #{gdnn_forward_pallas.1} parent=1 // pred_check
      _
    $region47: #{gdnn_forward_pallas.1} parent=1 // pred_check_branch
      %92 = sbr.rel (0) target = $region49
    $region48: #{gdnn_forward_pallas.1} parent=1 // pred_region
      %93 = dma.done [#allocation6], 1024
    $region49: #{gdnn_forward_pallas.1} parent=1 // pred_fallthru
      _
    // Predicated region
    $region50: #{gdnn_forward_pallas.1} parent=1 // pred_check
      _
    $region51: #{gdnn_forward_pallas.1} parent=1 // pred_check_branch
      %95 = sbr.rel (0) target = $region53
    $region52: #{gdnn_forward_pallas.1} parent=1 // pred_region
      %96 = dma.done [#allocation9], 1024
    $region53: #{gdnn_forward_pallas.1} parent=1 // pred_fallthru
      _
    // Predicated region
    $region54: #{gdnn_forward_pallas.1} parent=1 // pred_check
      _
    $region55: #{gdnn_forward_pallas.1} parent=1 // pred_check_branch
      %98 = sbr.rel (0) target = $region57
    $region56: #{gdnn_forward_pallas.1} parent=1 // pred_region
      %99 = dma.done [#allocation9], 1024
    $region57: #{gdnn_forward_pallas.1} parent=1 // pred_fallthru
      _
    %v101 = vld [vmem:[%s0] sm:$0xf]
    %v102 = vld [vmem:[%s0 + $0x4] sm:$0xf]
    %v103 = vld [vmem:[#allocation7] sm:$0xf]
    %v104 = vld [vmem:[#allocation7 + $0x4] sm:$0xf]
    %v105 = vld [vmem:[#allocation7 + $0x8] sm:$0xf]
    %v106 = vld [vmem:[#allocation7 + $0xc] sm:$0xf]
    %v107 = vld [vmem:[#allocation7 + $0x10] sm:$0xf]
    %v108 = vld [vmem:[#allocation7 + $0x14] sm:$0xf]
    %v109 = vld [vmem:[#allocation7 + $0x18] sm:$0xf]
    %v110 = vld [vmem:[#allocation7 + $0x1c] sm:$0xf]
    %v111 = vld [vmem:[#allocation7 + $0x20] sm:$0xf]
    %v112 = vld [vmem:[#allocation7 + $0x24] sm:$0xf]
    %v113 = vld [vmem:[#allocation7 + $0x28] sm:$0xf]
    %v114 = vld [vmem:[#allocation7 + $0x2c] sm:$0xf]
    %v115 = vld [vmem:[#allocation7 + $0x30] sm:$0xf]
    %v116 = vld [vmem:[#allocation7 + $0x34] sm:$0xf]
    %v117 = vld [vmem:[#allocation7 + $0x38] sm:$0xf]
    %v118 = vld [vmem:[#allocation7 + $0x3c] sm:$0xf]
    %v121 = vunpack.c.l.b16 %v101
    %v122 = vunpack.c.l.b16 %v102
    %v123 = vpack.c.b16 %v122, %v121
    %v141 = vunpack.c.l.b16 %v103
    %v142 = vunpack.c.l.b16 %v104
    %v143 = vunpack.c.l.b16 %v105
    %v144 = vunpack.c.l.b16 %v106
    %v145 = vunpack.c.l.b16 %v107
    %v146 = vunpack.c.l.b16 %v108
    %v147 = vunpack.c.l.b16 %v109
    %v148 = vunpack.c.l.b16 %v110
    %v149 = vunpack.c.l.b16 %v111
    %v150 = vunpack.c.l.b16 %v112
    %v151 = vunpack.c.l.b16 %v113
    %v152 = vunpack.c.l.b16 %v114
    %v153 = vunpack.c.l.b16 %v115
    %v154 = vunpack.c.l.b16 %v116
    %v155 = vunpack.c.l.b16 %v117
    %v156 = vunpack.c.l.b16 %v118
    %v157 = vpack.c.b16 %v142, %v141
    %v158 = vpack.c.b16 %v144, %v143
    %v159 = vpack.c.b16 %v146, %v145
    %v160 = vpack.c.b16 %v148, %v147
    %v161 = vpack.c.b16 %v150, %v149
    %v162 = vpack.c.b16 %v152, %v151
    %v163 = vpack.c.b16 %v154, %v153
    %v164 = vpack.c.b16 %v156, %v155
    %173 = vmatprep.subr.bf16.mxu0 0
    %174 = vmatpush1.bf16.msra.mxu0 %v164
    %175 = vmatprep.subr.bf16.mxu0 0
    %176 = vmatpush1.bf16.msra.mxu0 %v163
    %177 = vmatprep.subr.bf16.mxu0 0
    %178 = vmatpush1.bf16.msra.mxu0 %v162
    %179 = vmatprep.subr.bf16.mxu0 0
    %180 = vmatpush1.bf16.msra.mxu0 %v161
    %181 = vmatprep.subr.bf16.mxu0 0
    %182 = vmatpush1.bf16.msra.mxu0 %v160
    %183 = vmatprep.subr.bf16.mxu0 0
    %184 = vmatpush1.bf16.msra.mxu0 %v159
    %185 = vmatprep.subr.bf16.mxu0 0
    %186 = vmatpush1.bf16.msra.mxu0 %v158
    %187 = vmatprep.subr.bf16.mxu0 0
    %188 = vmatpush1.bf16.msra.mxu0 %v157
    %189 = vmatprep.subr.bf16.mxu0 0
    %190 = vmatpush2.bf16.msra.mxu0 0
    %191 = vmatprep.subr.bf16.mxu0 0
    %192 = vmatpush2.bf16.msra.mxu0 0
    %193 = vmatprep.subr.bf16.mxu0 0
    %194 = vmatpush2.bf16.msra.mxu0 0
    %195 = vmatprep.subr.bf16.mxu0 0
    %196 = vmatpush2.bf16.msra.mxu0 0
    %197 = vmatprep.subr.bf16.mxu0 0
    %198 = vmatpush2.bf16.msra.mxu0 0
    %199 = vmatprep.subr.bf16.mxu0 0
    %200 = vmatpush2.bf16.msra.mxu0 0
    %201 = vmatprep.subr.bf16.mxu0 0
    %202 = vmatpush2.bf16.msra.mxu0 0
    %203 = vmatprep.subr.bf16.mxu0 0
    %204 = vmatpush2.bf16.msra.mxu0 0
    %205 = vmatprep.mubr.bf16.mxu0 0
    %206 = vmatmul.mubr.bf16.gmra.mxu0 %v123
    %v207 = vpop.f32.mrf.mxu0
    %v208 = vadd.f32 0.0, %v207
    %v209 = vpop.f32.mrf.mxu0
    %v210 = vpop.f32.mrf.mxu0
    %v211 = vadd.f32 0.0, %v210
    %v212 = vpop.f32.mrf.mxu0
    %213 = vdwg.mxu0
    %v214 = vld [vmem:[%s6] sm:$0x1]
    %v216 = vlaneseq
    %v217 = vshrl.u32 %v216, 7
    %v218 = vsub.s32 0, %v217
    %v219 = vrot.slane %v214, %v218
    %v221 = vadd.f32 %v208, %v219
    %v222 = vadd.f32 %v211, %v219
    %v223 = vmax.f32 %v221, 0.0
    %v224 = vmax.f32 %v222, 0.0
    %v225 = vmul.f32 %v208, 0.5
    %v226 = vmul.f32 %v211, 0.5
    %v227 = vsub.f32 %v223, %v225
    %v228 = vsub.f32 %v224, %v226
    %v229 = vpack.c.bf16 %v228, %v227
    %v231 = vunpack.c.l.b16 %v229
    %v232 = vunpack.c.h.b16 %v229
    %v233 = vpack.c.b16 %v231, %v231
    %v234 = vpack.c.b16 %v232, %v232
    %237 = vst [vmem:[#allocation2 + $0x4] sm:$0xf] %v233
    %238 = vst [vmem:[#allocation2 + $0xc] sm:$0xf] %v234
    %v239 = vld [vmem:[#allocation8] sm:$0xf]
    %v240 = vld [vmem:[#allocation8 + $0x4] sm:$0xf]
    %v241 = vld [vmem:[#allocation8 + $0x8] sm:$0xf]
    %v242 = vld [vmem:[#allocation8 + $0xc] sm:$0xf]
    %v243 = vld [vmem:[#allocation8 + $0x10] sm:$0xf]
    %v244 = vld [vmem:[#allocation8 + $0x14] sm:$0xf]
    %v245 = vld [vmem:[#allocation8 + $0x18] sm:$0xf]
    %v246 = vld [vmem:[#allocation8 + $0x1c] sm:$0xf]
    %v247 = vld [vmem:[#allocation8 + $0x20] sm:$0xf]
    %v248 = vld [vmem:[#allocation8 + $0x24] sm:$0xf]
    %v249 = vld [vmem:[#allocation8 + $0x28] sm:$0xf]
    %v250 = vld [vmem:[#allocation8 + $0x2c] sm:$0xf]
    %v251 = vld [vmem:[#allocation8 + $0x30] sm:$0xf]
    %v252 = vld [vmem:[#allocation8 + $0x34] sm:$0xf]
    %v253 = vld [vmem:[#allocation8 + $0x38] sm:$0xf]
    %v254 = vld [vmem:[#allocation8 + $0x3c] sm:$0xf]
    %v255 = vld [vmem:[#allocation2 + $0x4] sm:$0xf]
    %v256 = vld [vmem:[#allocation2 + $0xc] sm:$0xf]
    %v257 = vld [vmem:[#allocation3] sm:$0xf]
    %v258 = vld [vmem:[#allocation3 + $0x4] sm:$0xf]
    %v259 = vld [vmem:[#allocation3 + $0x8] sm:$0xf]
    %v260 = vld [vmem:[#allocation3 + $0xc] sm:$0xf]
    %v261 = vld [vmem:[#allocation3 + $0x10] sm:$0xf]
    %v262 = vld [vmem:[#allocation3 + $0x14] sm:$0xf]
    %v263 = vld [vmem:[#allocation3 + $0x18] sm:$0xf]
    %v264 = vld [vmem:[#allocation3 + $0x1c] sm:$0xf]
    %v265 = vld [vmem:[#allocation3 + $0x20] sm:$0xf]
    %v266 = vld [vmem:[#allocation3 + $0x24] sm:$0xf]
    %v267 = vld [vmem:[#allocation3 + $0x28] sm:$0xf]
    %v268 = vld [vmem:[#allocation3 + $0x2c] sm:$0xf]
    %v269 = vld [vmem:[#allocation3 + $0x30] sm:$0xf]
    %v270 = vld [vmem:[#allocation3 + $0x34] sm:$0xf]
    %v271 = vld [vmem:[#allocation3 + $0x38] sm:$0xf]
    %v272 = vld [vmem:[#allocation3 + $0x3c] sm:$0xf]
    %v275 = vunpack.c.l.b16 %v255
    %v276 = vunpack.c.l.b16 %v256
    %v277 = vpack.c.b16 %v276, %v275
    %v295 = vunpack.c.l.b16 %v257
    %v296 = vunpack.c.l.b16 %v258
    %v297 = vunpack.c.l.b16 %v259
    %v298 = vunpack.c.l.b16 %v260
    %v299 = vunpack.c.l.b16 %v261
    %v300 = vunpack.c.l.b16 %v262
    %v301 = vunpack.c.l.b16 %v263
    %v302 = vunpack.c.l.b16 %v264
    %v303 = vunpack.c.l.b16 %v265
    %v304 = vunpack.c.l.b16 %v266
    %v305 = vunpack.c.l.b16 %v267
    %v306 = vunpack.c.l.b16 %v268
    %v307 = vunpack.c.l.b16 %v269
    %v308 = vunpack.c.l.b16 %v270
    %v309 = vunpack.c.l.b16 %v271
    %v310 = vunpack.c.l.b16 %v272
    %v311 = vpack.c.b16 %v296, %v295
    %v312 = vpack.c.b16 %v298, %v297
    %v313 = vpack.c.b16 %v300, %v299
    %v314 = vpack.c.b16 %v302, %v301
    %v315 = vpack.c.b16 %v304, %v303
    %v316 = vpack.c.b16 %v306, %v305
    %v317 = vpack.c.b16 %v308, %v307
    %v318 = vpack.c.b16 %v310, %v309
    %327 = vmatprep.subr.bf16.mxu0 0
    %328 = vmatpush1.bf16.msra.mxu0 %v318
    %329 = vmatprep.subr.bf16.mxu0 0
    %330 = vmatpush1.bf16.msra.mxu0 %v317
    %331 = vmatprep.subr.bf16.mxu0 0
    %332 = vmatpush1.bf16.msra.mxu0 %v316
    %333 = vmatprep.subr.bf16.mxu0 0
    %334 = vmatpush1.bf16.msra.mxu0 %v315
    %335 = vmatprep.subr.bf16.mxu0 0
    %336 = vmatpush1.bf16.msra.mxu0 %v314
    %337 = vmatprep.subr.bf16.mxu0 0
    %338 = vmatpush1.bf16.msra.mxu0 %v313
    %339 = vmatprep.subr.bf16.mxu0 0
    %340 = vmatpush1.bf16.msra.mxu0 %v312
    %341 = vmatprep.subr.bf16.mxu0 0
    %342 = vmatpush1.bf16.msra.mxu0 %v311
    %343 = vmatprep.subr.bf16.mxu0 0
    %344 = vmatpush2.bf16.msra.mxu0 0
    %345 = vmatprep.subr.bf16.mxu0 0
    %346 = vmatpush2.bf16.msra.mxu0 0
    %347 = vmatprep.subr.bf16.mxu0 0
    %348 = vmatpush2.bf16.msra.mxu0 0
    %349 = vmatprep.subr.bf16.mxu0 0
    %350 = vmatpush2.bf16.msra.mxu0 0
    %351 = vmatprep.subr.bf16.mxu0 0
    %352 = vmatpush2.bf16.msra.mxu0 0
    %353 = vmatprep.subr.bf16.mxu0 0
    %354 = vmatpush2.bf16.msra.mxu0 0
    %355 = vmatprep.subr.bf16.mxu0 0
    %356 = vmatpush2.bf16.msra.mxu0 0
    %357 = vmatprep.subr.bf16.mxu0 0
    %358 = vmatpush2.bf16.msra.mxu0 0
    %359 = vmatprep.mubr.bf16.mxu0 0
    %360 = vmatmul.mubr.bf16.gmra.mxu0 %v277
    %v361 = vpop.f32.mrf.mxu0
    %v362 = vadd.f32 0.0, %v361
    %v363 = vpop.f32.mrf.mxu0
    %v364 = vpop.f32.mrf.mxu0
    %v365 = vadd.f32 0.0, %v364
    %v366 = vpop.f32.mrf.mxu0
    %367 = vdwg.mxu0
    %v384 = vunpack.c.l.b16 %v239
    %v385 = vunpack.c.l.b16 %v240
    %v386 = vunpack.c.l.b16 %v241
    %v387 = vunpack.c.l.b16 %v242
    %v388 = vunpack.c.l.b16 %v243
    %v389 = vunpack.c.l.b16 %v244
    %v390 = vunpack.c.l.b16 %v245
    %v391 = vunpack.c.l.b16 %v246
    %v392 = vunpack.c.l.b16 %v247
    %v393 = vunpack.c.l.b16 %v248
    %v394 = vunpack.c.l.b16 %v249
    %v395 = vunpack.c.l.b16 %v250
    %v396 = vunpack.c.l.b16 %v251
    %v397 = vunpack.c.l.b16 %v252
    %v398 = vunpack.c.l.b16 %v253
    %v399 = vunpack.c.l.b16 %v254
    %v400 = vpack.c.b16 %v385, %v384
    %v401 = vpack.c.b16 %v387, %v386
    %v402 = vpack.c.b16 %v389, %v388
    %v403 = vpack.c.b16 %v391, %v390
    %v404 = vpack.c.b16 %v393, %v392
    %v405 = vpack.c.b16 %v395, %v394
    %v406 = vpack.c.b16 %v397, %v396
    %v407 = vpack.c.b16 %v399, %v398
    %416 = vmatprep.subr.bf16.mxu0 0
    %417 = vmatpush1.bf16.msra.mxu0 %v407
    %418 = vmatprep.subr.bf16.mxu0 0
    %419 = vmatpush1.bf16.msra.mxu0 %v406
    %420 = vmatprep.subr.bf16.mxu0 0
    %421 = vmatpush1.bf16.msra.mxu0 %v405
    %422 = vmatprep.subr.bf16.mxu0 0
    %423 = vmatpush1.bf16.msra.mxu0 %v404
    %424 = vmatprep.subr.bf16.mxu0 0
    %425 = vmatpush1.bf16.msra.mxu0 %v403
    %426 = vmatprep.subr.bf16.mxu0 0
    %427 = vmatpush1.bf16.msra.mxu0 %v402
    %428 = vmatprep.subr.bf16.mxu0 0
    %429 = vmatpush1.bf16.msra.mxu0 %v401
    %430 = vmatprep.subr.bf16.mxu0 0
    %431 = vmatpush1.bf16.msra.mxu0 %v400
    %432 = vmatprep.subr.bf16.mxu0 0
    %433 = vmatpush2.bf16.msra.mxu0 0
    %434 = vmatprep.subr.bf16.mxu0 0
    %435 = vmatpush2.bf16.msra.mxu0 0
    %436 = vmatprep.subr.bf16.mxu0 0
    %437 = vmatpush2.bf16.msra.mxu0 0
    %438 = vmatprep.subr.bf16.mxu0 0
    %439 = vmatpush2.bf16.msra.mxu0 0
    %440 = vmatprep.subr.bf16.mxu0 0
    %441 = vmatpush2.bf16.msra.mxu0 0
    %442 = vmatprep.subr.bf16.mxu0 0
    %443 = vmatpush2.bf16.msra.mxu0 0
    %444 = vmatprep.subr.bf16.mxu0 0
    %445 = vmatpush2.bf16.msra.mxu0 0
    %446 = vmatprep.subr.bf16.mxu0 0
    %447 = vmatpush2.bf16.msra.mxu0 0
    %448 = vmatprep.mubr.bf16.mxu0 0
    %449 = vmatmul.mubr.bf16.gmra.mxu0 %v123
    %v450 = vpop.f32.mrf.mxu0
    %v451 = vadd.f32 %v362, %v450
    %v452 = vpop.f32.mrf.mxu0
    %v453 = vpop.f32.mrf.mxu0
    %v454 = vadd.f32 %v365, %v453
    %v455 = vpop.f32.mrf.mxu0
    %456 = vdwg.mxu0
    %v457 = vld [vmem:[%s7] sm:$0x1]
    %v459 = vlaneseq
    %v460 = vshrl.u32 %v459, 7
    %v461 = vsub.s32 0, %v460
    %v462 = vrot.slane %v457, %v461
    %v464 = vadd.f32 %v451, %v462
    %v465 = vadd.f32 %v454, %v462
    %v466 = vmax.f32 %v464, 0.0
    %v467 = vmax.f32 %v465, 0.0
    %v468 = vmul.f32 %v451, 0.5
    %v469 = vmul.f32 %v454, 0.5
    %v470 = vsub.f32 %v466, %v468
    %v471 = vsub.f32 %v467, %v469
    %v472 = vpack.c.bf16 %v471, %v470
    %v474 = vunpack.c.l.b16 %v472
    %v475 = vunpack.c.h.b16 %v472
    %v476 = vpack.c.b16 %v474, %v474
    %v477 = vpack.c.b16 %v475, %v475
    %480 = vst [vmem:[#allocation2] sm:$0xf] %v476
    %481 = vst [vmem:[#allocation2 + $0x8] sm:$0xf] %v477
    %v482 = vld [vmem:[#allocation10] sm:$0xf]
    %v483 = vld [vmem:[#allocation10 + $0x4] sm:$0xf]
    %v484 = vld [vmem:[#allocation10 + $0x8] sm:$0xf]
    %v485 = vld [vmem:[#allocation10 + $0xc] sm:$0xf]
    %v486 = vld [vmem:[#allocation10 + $0x10] sm:$0xf]
    %v487 = vld [vmem:[#allocation10 + $0x14] sm:$0xf]
    %v488 = vld [vmem:[#allocation10 + $0x18] sm:$0xf]
    %v489 = vld [vmem:[#allocation10 + $0x1c] sm:$0xf]
    %v490 = vld [vmem:[#allocation10 + $0x20] sm:$0xf]
    %v491 = vld [vmem:[#allocation10 + $0x24] sm:$0xf]
    %v492 = vld [vmem:[#allocation10 + $0x28] sm:$0xf]
    %v493 = vld [vmem:[#allocation10 + $0x2c] sm:$0xf]
    %v494 = vld [vmem:[#allocation10 + $0x30] sm:$0xf]
    %v495 = vld [vmem:[#allocation10 + $0x34] sm:$0xf]
    %v496 = vld [vmem:[#allocation10 + $0x38] sm:$0xf]
    %v497 = vld [vmem:[#allocation10 + $0x3c] sm:$0xf]
    %v498 = vld [vmem:[#allocation2] sm:$0xff]
    %v499 = vld [vmem:[#allocation2 + $0x8] sm:$0xff]
    %v500 = vld [vmem:[#allocation5] sm:$0xf]
    %v501 = vld [vmem:[#allocation5 + $0x4] sm:$0xf]
    %v502 = vld [vmem:[#allocation5 + $0x8] sm:$0xf]
    %v503 = vld [vmem:[#allocation5 + $0xc] sm:$0xf]
    %v504 = vld [vmem:[#allocation5 + $0x10] sm:$0xf]
    %v505 = vld [vmem:[#allocation5 + $0x14] sm:$0xf]
    %v506 = vld [vmem:[#allocation5 + $0x18] sm:$0xf]
    %v507 = vld [vmem:[#allocation5 + $0x1c] sm:$0xf]
    %v508 = vld [vmem:[#allocation5 + $0x20] sm:$0xf]
    %v509 = vld [vmem:[#allocation5 + $0x24] sm:$0xf]
    %v510 = vld [vmem:[#allocation5 + $0x28] sm:$0xf]
    %v511 = vld [vmem:[#allocation5 + $0x2c] sm:$0xf]
    %v512 = vld [vmem:[#allocation5 + $0x30] sm:$0xf]
    %v513 = vld [vmem:[#allocation5 + $0x34] sm:$0xf]
    %v514 = vld [vmem:[#allocation5 + $0x38] sm:$0xf]
    %v515 = vld [vmem:[#allocation5 + $0x3c] sm:$0xf]
    %v516 = vld [vmem:[#allocation5 + $0x40] sm:$0xf]
    %v517 = vld [vmem:[#allocation5 + $0x44] sm:$0xf]
    %v518 = vld [vmem:[#allocation5 + $0x48] sm:$0xf]
    %v519 = vld [vmem:[#allocation5 + $0x4c] sm:$0xf]
    %v520 = vld [vmem:[#allocation5 + $0x50] sm:$0xf]
    %v521 = vld [vmem:[#allocation5 + $0x54] sm:$0xf]
    %v522 = vld [vmem:[#allocation5 + $0x58] sm:$0xf]
    %v523 = vld [vmem:[#allocation5 + $0x5c] sm:$0xf]
    %v524 = vld [vmem:[#allocation5 + $0x60] sm:$0xf]
    %v525 = vld [vmem:[#allocation5 + $0x64] sm:$0xf]
    %v526 = vld [vmem:[#allocation5 + $0x68] sm:$0xf]
    %v527 = vld [vmem:[#allocation5 + $0x6c] sm:$0xf]
    %v528 = vld [vmem:[#allocation5 + $0x70] sm:$0xf]
    %v529 = vld [vmem:[#allocation5 + $0x74] sm:$0xf]
    %v530 = vld [vmem:[#allocation5 + $0x78] sm:$0xf]
    %v531 = vld [vmem:[#allocation5 + $0x7c] sm:$0xf]
    %v534 = vunpack.c.l.b16 %v498
    %v535 = vunpack.c.h.b16 %v498
    %v536 = vunpack.c.l.b16 %v499
    %v537 = vunpack.c.h.b16 %v499
    %v538 = vpack.c.b16 %v536, %v534
    %v539 = vpack.c.b16 %v537, %v535
    %v574 = vunpack.c.l.b16 %v500
    %v575 = vunpack.c.l.b16 %v501
    %v576 = vunpack.c.l.b16 %v502
    %v577 = vunpack.c.l.b16 %v503
    %v578 = vunpack.c.l.b16 %v504
    %v579 = vunpack.c.l.b16 %v505
    %v580 = vunpack.c.l.b16 %v506
    %v581 = vunpack.c.l.b16 %v507
    %v582 = vunpack.c.l.b16 %v508
    %v583 = vunpack.c.l.b16 %v509
    %v584 = vunpack.c.l.b16 %v510
    %v585 = vunpack.c.l.b16 %v511
    %v586 = vunpack.c.l.b16 %v512
    %v587 = vunpack.c.l.b16 %v513
    %v588 = vunpack.c.l.b16 %v514
    %v589 = vunpack.c.l.b16 %v515
    %v590 = vunpack.c.l.b16 %v516
    %v591 = vunpack.c.l.b16 %v517
    %v592 = vunpack.c.l.b16 %v518
    %v593 = vunpack.c.l.b16 %v519
    %v594 = vunpack.c.l.b16 %v520
    %v595 = vunpack.c.l.b16 %v521
    %v596 = vunpack.c.l.b16 %v522
    %v597 = vunpack.c.l.b16 %v523
    %v598 = vunpack.c.l.b16 %v524
    %v599 = vunpack.c.l.b16 %v525
    %v600 = vunpack.c.l.b16 %v526
    %v601 = vunpack.c.l.b16 %v527
    %v602 = vunpack.c.l.b16 %v528
    %v603 = vunpack.c.l.b16 %v529
    %v604 = vunpack.c.l.b16 %v530
    %v605 = vunpack.c.l.b16 %v531
    %v606 = vpack.c.b16 %v575, %v574
    %v607 = vpack.c.b16 %v577, %v576
    %v608 = vpack.c.b16 %v579, %v578
    %v609 = vpack.c.b16 %v581, %v580
    %v610 = vpack.c.b16 %v583, %v582
    %v611 = vpack.c.b16 %v585, %v584
    %v612 = vpack.c.b16 %v587, %v586
    %v613 = vpack.c.b16 %v589, %v588
    %v614 = vpack.c.b16 %v591, %v590
    %v615 = vpack.c.b16 %v593, %v592
    %v616 = vpack.c.b16 %v595, %v594
    %v617 = vpack.c.b16 %v597, %v596
    %v618 = vpack.c.b16 %v599, %v598
    %v619 = vpack.c.b16 %v601, %v600
    %v620 = vpack.c.b16 %v603, %v602
    %v621 = vpack.c.b16 %v605, %v604
    %638 = vmatprep.subr.bf16.mxu0 0
    %639 = vmatpush1.bf16.msra.mxu0 %v613
    %640 = vmatprep.subr.bf16.mxu0 0
    %641 = vmatpush1.bf16.msra.mxu0 %v612
    %642 = vmatprep.subr.bf16.mxu0 0
    %643 = vmatpush1.bf16.msra.mxu0 %v611
    %644 = vmatprep.subr.bf16.mxu0 0
    %645 = vmatpush1.bf16.msra.mxu0 %v610
    %646 = vmatprep.subr.bf16.mxu0 0
    %647 = vmatpush1.bf16.msra.mxu0 %v609
    %648 = vmatprep.subr.bf16.mxu0 0
    %649 = vmatpush1.bf16.msra.mxu0 %v608
    %650 = vmatprep.subr.bf16.mxu0 0
    %651 = vmatpush1.bf16.msra.mxu0 %v607
    %652 = vmatprep.subr.bf16.mxu0 0
    %653 = vmatpush1.bf16.msra.mxu0 %v606
    %654 = vmatprep.subr.bf16.mxu0 0
    %655 = vmatpush2.bf16.msra.mxu0 %v621
    %656 = vmatprep.subr.bf16.mxu0 0
    %657 = vmatpush2.bf16.msra.mxu0 %v620
    %658 = vmatprep.subr.bf16.mxu0 0
    %659 = vmatpush2.bf16.msra.mxu0 %v619
    %660 = vmatprep.subr.bf16.mxu0 0
    %661 = vmatpush2.bf16.msra.mxu0 %v618
    %662 = vmatprep.subr.bf16.mxu0 0
    %663 = vmatpush2.bf16.msra.mxu0 %v617
    %664 = vmatprep.subr.bf16.mxu0 0
    %665 = vmatpush2.bf16.msra.mxu0 %v616
    %666 = vmatprep.subr.bf16.mxu0 0
    %667 = vmatpush2.bf16.msra.mxu0 %v615
    %668 = vmatprep.subr.bf16.mxu0 0
    %669 = vmatpush2.bf16.msra.mxu0 %v614
    %670 = vmatprep.mubr.bf16.mxu0 %v539
    %671 = vmatmul.mubr.bf16.gmra.mxu0 %v538
    %v672 = vpop.f32.mrf.mxu0
    %v673 = vadd.f32 0.0, %v672
    %v674 = vpop.f32.mrf.mxu0
    %v675 = vpop.f32.mrf.mxu0
    %v676 = vadd.f32 0.0, %v675
    %v677 = vpop.f32.mrf.mxu0
    %678 = vdwg.mxu0
    %v695 = vunpack.c.l.b16 %v482
    %v696 = vunpack.c.l.b16 %v483
    %v697 = vunpack.c.l.b16 %v484
    %v698 = vunpack.c.l.b16 %v485
    %v699 = vunpack.c.l.b16 %v486
    %v700 = vunpack.c.l.b16 %v487
    %v701 = vunpack.c.l.b16 %v488
    %v702 = vunpack.c.l.b16 %v489
    %v703 = vunpack.c.l.b16 %v490
    %v704 = vunpack.c.l.b16 %v491
    %v705 = vunpack.c.l.b16 %v492
    %v706 = vunpack.c.l.b16 %v493
    %v707 = vunpack.c.l.b16 %v494
    %v708 = vunpack.c.l.b16 %v495
    %v709 = vunpack.c.l.b16 %v496
    %v710 = vunpack.c.l.b16 %v497
    %v711 = vpack.c.b16 %v696, %v695
    %v712 = vpack.c.b16 %v698, %v697
    %v713 = vpack.c.b16 %v700, %v699
    %v714 = vpack.c.b16 %v702, %v701
    %v715 = vpack.c.b16 %v704, %v703
    %v716 = vpack.c.b16 %v706, %v705
    %v717 = vpack.c.b16 %v708, %v707
    %v718 = vpack.c.b16 %v710, %v709
    %727 = vmatprep.subr.bf16.mxu0 0
    %728 = vmatpush1.bf16.msra.mxu0 %v718
    %729 = vmatprep.subr.bf16.mxu0 0
    %730 = vmatpush1.bf16.msra.mxu0 %v717
    %731 = vmatprep.subr.bf16.mxu0 0
    %732 = vmatpush1.bf16.msra.mxu0 %v716
    %733 = vmatprep.subr.bf16.mxu0 0
    %734 = vmatpush1.bf16.msra.mxu0 %v715
    %735 = vmatprep.subr.bf16.mxu0 0
    %736 = vmatpush1.bf16.msra.mxu0 %v714
    %737 = vmatprep.subr.bf16.mxu0 0
    %738 = vmatpush1.bf16.msra.mxu0 %v713
    %739 = vmatprep.subr.bf16.mxu0 0
    %740 = vmatpush1.bf16.msra.mxu0 %v712
    %741 = vmatprep.subr.bf16.mxu0 0
    %742 = vmatpush1.bf16.msra.mxu0 %v711
    %743 = vmatprep.subr.bf16.mxu0 0
    %744 = vmatpush2.bf16.msra.mxu0 0
    %745 = vmatprep.subr.bf16.mxu0 0
    %746 = vmatpush2.bf16.msra.mxu0 0
    %747 = vmatprep.subr.bf16.mxu0 0
    %748 = vmatpush2.bf16.msra.mxu0 0
    %749 = vmatprep.subr.bf16.mxu0 0
    %750 = vmatpush2.bf16.msra.mxu0 0
    %751 = vmatprep.subr.bf16.mxu0 0
    %752 = vmatpush2.bf16.msra.mxu0 0
    %753 = vmatprep.subr.bf16.mxu0 0
    %754 = vmatpush2.bf16.msra.mxu0 0
    %755 = vmatprep.subr.bf16.mxu0 0
    %756 = vmatpush2.bf16.msra.mxu0 0
    %757 = vmatprep.subr.bf16.mxu0 0
    %758 = vmatpush2.bf16.msra.mxu0 0
    %759 = vmatprep.mubr.bf16.mxu0 0
    %760 = vmatmul.mubr.bf16.gmra.mxu0 %v123
    %v761 = vpop.f32.mrf.mxu0
    %v762 = vadd.f32 %v673, %v761
    %v763 = vpop.f32.mrf.mxu0
    %v764 = vpop.f32.mrf.mxu0
    %v765 = vadd.f32 %v676, %v764
    %v766 = vpop.f32.mrf.mxu0
    %767 = vdwg.mxu0
    %v768 = vld [vmem:[%s8] sm:$0x1]
    %v770 = vlaneseq
    %v771 = vshrl.u32 %v770, 7
    %v772 = vsub.s32 0, %v771
    %v773 = vrot.slane %v768, %v772
    %v775 = vadd.f32 %v762, %v773
    %v776 = vadd.f32 %v765, %v773
    %777 = vst [vmem:[%s9] sm:$0xff] %v775
    %778 = vst [vmem:[%s9 + $0x8] sm:$0xff] %v776
    // Predicated region
    $region58: #{gdnn_forward_pallas.1} parent=1 // pred_check
      _
    $region59: #{gdnn_forward_pallas.1} parent=1 // pred_check_branch
      %780 = sbr.rel (0) target = $region61
    $region60: #{gdnn_forward_pallas.1} parent=1 // pred_region
      _
    $region61: #{gdnn_forward_pallas.1} parent=1 // pred_fallthru
      _
    // Predicated region
    $region62: #{gdnn_forward_pallas.1} parent=1 // pred_check
      _
    $region63: #{gdnn_forward_pallas.1} parent=1 // pred_check_branch
      %782 = sbr.rel (0) target = $region65
    $region64: #{gdnn_forward_pallas.1} parent=1 // pred_region
      _
    $region65: #{gdnn_forward_pallas.1} parent=1 // pred_fallthru
      _
    %783 = vsyncpa [#allocation4], 1
    %784 = vsyncpa [#allocation6], 1
    %785 = vsyncpa [#allocation9], 1

</llo_original>
